<compile_context>
chip_gen: v5e
topology: v5e:2x2
jax: 0.10.0
libtpu: 0.0.40
codegen_flags: <defaults>
</compile_context>

<pallas_src>
import numpy as np
import jax
import jax.numpy as jnp
from jax import lax
from jax.experimental import pallas as pl
from jax.experimental.pallas import tpu as pltpu

# ----- config (LETTER_TO_ID / NIQQUD_TO_ID sizes chosen deterministically) ---
VOCAB = 32          # len(LETTER_TO_ID)
EMB = 32            # embedding_dim
HID = 64            # hidden_dim
NIQ = 16            # len(NIQQUD_TO_ID)
DAG = 2             # dagesh_classes
SHIN = 3            # shin_classes
HEAD_TOT = NIQ + DAG + SHIN          # 21
HEAD_PAD = 128                       # lane-dense padded head width


# ------------------------------ wrapper + kernel ------------------------------
def doti_forward(x_ids, fused):
    """x_ids: (B, T) int32 -> (niqqud (B,T,NIQ), dagesh (B,T,DAG), shin (B,T,SHIN))."""
    B, T = x_ids.shape
    n_rows = T * B
    H = HID
    H2 = 2 * H            # 128
    H8 = 8 * H            # 512

    # time-major flattened ids (row = t*B + b); tiny int op in the wrapper
    ids_tm = jnp.transpose(x_ids).reshape(n_rows, 1).astype(jnp.int32)

    def kernel(ids_ref,        # (T*B, 1) int32, time-major rows (t*B + b)
               w_embin_ref,    # (VOCAB, 16H) = emb @ W_in, fwd-half biases folded in
               w_hh_ref,       # (2H, 8H) block-diagonal, gate-interleaved
               w_head_ref,     # (2H, HEAD_PAD) fused + padded heads
               b_head_ref,     # (1, HEAD_PAD)
               out_ref):       # (T*B, HEAD_PAD) lane/sublane dense
        vocab = w_embin_ref.shape[0]

        # ---- fused embedding + input projection: one one-hot MXU matmul -----
        ids = ids_ref[...]                                              # (T*B, 1)
        onehot = (ids == lax.broadcasted_iota(jnp.int32, (n_rows, vocab), 1)
                  ).astype(jnp.float32)                                 # (T*B, VOCAB)
        gin_all = jnp.dot(onehot, w_embin_ref[...],
                          preferred_element_type=jnp.float32)           # (T*B, 16H)
        gin_f = gin_all[:, :H8]      # forward gates (+ BOTH directions' biases)
        gin_b = gin_all[:, H8:]      # backward gates (no bias — see fuse_params)

        # ---- fused bidirectional recurrence: fully unrolled, 1 dot / step ---
        h = jnp.zeros((B, H2), jnp.float32)      # [h_f | h_b]
        c = jnp.zeros((B, H2), jnp.float32)      # [c_f | c_b]
        h_steps = []
        for i in range(T):                        # static unroll (T = 8)
            # input-gate contribution (static slices of register values)
            pre = (gin_f[i * B:(i + 1) * B, :]
                   + gin_b[(T - 1 - i) * B:(T - i) * B, :])             # (B, 8H)
            gates = pre + jnp.dot(h, w_hh_ref[...],
                                  preferred_element_type=jnp.float32)   # (B, 8H)
            # gate slices are 128-lane aligned thanks to the interleaved layout
            i_g = jax.nn.sigmoid(gates[:, 0 * H2:1 * H2])
            f_g = jax.nn.sigmoid(gates[:, 1 * H2:2 * H2])
            g_g = jnp.tanh(gates[:, 2 * H2:3 * H2])
            o_g = jax.nn.sigmoid(gates[:, 3 * H2:4 * H2])
            c = f_g * c + i_g * g_g
            h = o_g * jnp.tanh(c)
            h_steps.append(h)

        # ---- assemble (T*B, 2H) in registers: fwd half from step t,
        #      bwd half from step T-1-t, merged with a lane-mask select --------
        lane = lax.broadcasted_iota(jnp.int32, (B, H2), 1)
        rows = [jnp.where(lane < H, h_steps[t], h_steps[T - 1 - t])
                for t in range(T)]
        out2 = jnp.concatenate(rows, axis=0)                            # (T*B, 2H)

        # ---- fused heads: one lane-dense padded matmul, unmasked store -------
        heads = (jnp.dot(out2, w_head_ref[...],
                         preferred_element_type=jnp.float32)
                 + b_head_ref[...])                                     # (T*B, 128)
        out_ref[...] = heads

    vmem = pl.BlockSpec(memory_space=pltpu.MemorySpace.VMEM)
    args = (ids_tm, fused["w_embin"], fused["w_hh"],
            fused["w_head"], fused["b_head"])

    flops = (2 * n_rows * VOCAB * (2 * H8)       # fused one-hot embed+input proj
             + T * 2 * B * H2 * H8               # recurrence
             + 2 * n_rows * H2 * HEAD_PAD        # fused heads
             + 12 * T * B * H2)                  # gate elementwise
    transcendentals = 5 * T * B * H2
    bytes_accessed = 4 * (n_rows
                          + VOCAB * 2 * H8
                          + H2 * H8 + H2 * HEAD_PAD + HEAD_PAD
                          + n_rows * HEAD_PAD)
    cost = pl.CostEstimate(flops=flops, transcendentals=transcendentals,
                           bytes_accessed=bytes_accessed)

    heads_flat = pl.pallas_call(
        kernel,
        out_shape=jax.ShapeDtypeStruct((n_rows, HEAD_PAD), jnp.float32),
        in_specs=[vmem] * len(args),
        out_specs=vmem,
        cost_estimate=cost,
    )(*args)

    heads_bt = jnp.transpose(heads_flat.reshape(T, B, HEAD_PAD), (1, 0, 2))
    niq = heads_bt[..., :NIQ]
    dag = heads_bt[..., NIQ:NIQ + DAG]
    shn = heads_bt[..., NIQ + DAG:HEAD_TOT]
    return niq, dag, shn


# -------------------- one-time weight re-layout (fusion) ---------------------
def fuse_params(p):
    """Interleave / fold / fuse / pad the DotiModel weights for the Pallas kernel."""
    H = HID
    # gate-interleaved column layout: [i_f i_b | f_f f_b | g_f g_b | o_f o_b]
    zeros_in = jnp.zeros((EMB, 4, H), jnp.float32)
    wih_f4 = p["wih_f"].reshape(EMB, 4, H)
    wih_b4 = p["wih_b"].reshape(EMB, 4, H)
    w_in_f = jnp.concatenate([wih_f4, zeros_in], axis=2).reshape(EMB, 8 * H)
    w_in_b = jnp.concatenate([zeros_in, wih_b4], axis=2).reshape(EMB, 8 * H)
    w_in = jnp.concatenate([w_in_f, w_in_b], axis=1)              # (E, 16H)

    # BOTH directions' biases ride in the FORWARD half of the gin path; correct
    # only because biases are time-invariant (added exactly once per time step).
    b_in = jnp.concatenate([p["b_f"].reshape(1, 4, H),
                            p["b_b"].reshape(1, 4, H)], axis=2).reshape(1, 8 * H)
    b_row = jnp.concatenate([b_in, jnp.zeros((1, 8 * H), jnp.float32)], axis=1)

    # Fold embedding + biases into one (VOCAB, 16H) table:
    #   onehot @ (emb @ W_in + b_row)  ==  (onehot @ emb) @ W_in + b_row
    # (one-hot rows sum to 1; out-of-range ids -> zero row, i.e. zero embedding
    #  AND zero bias — acceptable since ids are guaranteed in [0, VOCAB)).
    w_embin = p["embedding"].astype(jnp.float32) @ w_in + b_row   # (VOCAB, 16H)

    zeros_hh = jnp.zeros((H, 4, H), jnp.float32)
    whh_f4 = p["whh_f"].reshape(H, 4, H)
    whh_b4 = p["whh_b"].reshape(H, 4, H)
    top = jnp.concatenate([whh_f4, zeros_hh], axis=2)             # rows from h_f
    bot = jnp.concatenate([zeros_hh, whh_b4], axis=2)             # rows from h_b
    w_hh = jnp.concatenate([top, bot], axis=0).reshape(2 * H, 8 * H)

    w_head = jnp.concatenate([p["wn"], p["wd"], p["ws"]], axis=1)  # (2H, 21)
    w_head = jnp.pad(w_head, ((0, 0), (0, HEAD_PAD - HEAD_TOT)))
    b_head = jnp.concatenate([p["bn"], p["bd"], p["bs"]], axis=1)
    b_head = jnp.pad(b_head, ((0, 0), (0, HEAD_PAD - HEAD_TOT)))

    return {"w_embin": w_embin, "w_hh": w_hh,
            "w_head": w_head, "b_head": b_head}


# --------------------------- pure-JAX reference -------------------------------
def ref_forward(x_ids, params):
    emb = params["embedding"][x_ids].astype(jnp.float32)     # (B, T, E)
    B, T, _ = emb.shape

    def run_dir(x_seq, wih, whh, b):
        def step(carry, x_t):
            h, c = carry
            gates = x_t @ wih + h @ whh + b
            i = jax.nn.sigmoid(gates[:, :HID])
            f = jax.nn.sigmoid(gates[:, HID:2 * HID])
            g = jnp.tanh(gates[:, 2 * HID:3 * HID])
            o = jax.nn.sigmoid(gates[:, 3 * HID:])
            c = f * c + i * g
            h = o * jnp.tanh(c)
            return (h, c), h
        init = (jnp.zeros((B, HID), jnp.float32), jnp.zeros((B, HID), jnp.float32))
        _, hs = lax.scan(step, init, jnp.transpose(x_seq, (1, 0, 2)))
        return jnp.transpose(hs, (1, 0, 2))                  # (B, T, H)

    hf = run_dir(emb, params["wih_f"], params["whh_f"], params["b_f"])
    hb = run_dir(emb[:, ::-1, :], params["wih_b"], params["whh_b"], params["b_b"])[:, ::-1, :]
    out = jnp.concatenate([hf, hb], axis=-1)                 # (B, T, 2H)
    return (out @ params["wn"] + params["bn"],
            out @ params["wd"] + params["bd"],
            out @ params["ws"] + params["bs"])


# ------------------------------- params ---------------------------------------
def init_params(key):
    ks = jax.random.split(key, 12)
    s = 0.1
    return {
        "embedding": jax.random.normal(ks[0], (VOCAB, EMB), jnp.float32) * s,
        # weights stored pre-transposed: (in_dim, 4H) so the math is x @ W
        "wih_f": jax.random.normal(ks[1], (EMB, 4 * HID), jnp.float32) * s,
        "whh_f": jax.random.normal(ks[2], (HID, 4 * HID), jnp.float32) * s,
        "b_f":   jax.random.normal(ks[3], (1, 4 * HID), jnp.float32) * s,  # b_ih + b_hh combined
        "wih_b": jax.random.normal(ks[4], (EMB, 4 * HID), jnp.float32) * s,
        "whh_b": jax.random.normal(ks[5], (HID, 4 * HID), jnp.float32) * s,
        "b_b":   jax.random.normal(ks[6], (1, 4 * HID), jnp.float32) * s,
        "wn": jax.random.normal(ks[7], (2 * HID, NIQ), jnp.float32) * s,
        "bn": jax.random.normal(ks[8], (1, NIQ), jnp.float32) * s,
        "wd": jax.random.normal(ks[9], (2 * HID, DAG), jnp.float32) * s,
        "bd": jax.random.normal(ks[10], (1, DAG), jnp.float32) * s,
        "ws": jax.random.normal(ks[11], (2 * HID, SHIN), jnp.float32) * s,
        "bs": jnp.zeros((1, SHIN), jnp.float32),
    }


if __name__ == "__main__":
    key = jax.random.PRNGKey(0)
    B, T = 2, 8
    x_ids = jax.random.randint(key, (B, T), 0, VOCAB, dtype=jnp.int32)
    params = init_params(jax.random.PRNGKey(42))
    fused = jax.tree_util.tree_map(jax.block_until_ready, fuse_params(params))

    fwd = jax.jit(doti_forward)
    outs = fwd(x_ids, fused)
    outs = jax.block_until_ready(outs)

    refs = ref_forward(x_ids, params)
    for o, r in zip(outs, refs):
        assert o.shape == r.shape, (o.shape, r.shape)
        np.testing.assert_allclose(np.asarray(o), np.asarray(r), atol=2e-4, rtol=2e-4)

    print("KERNEL_OK")
</pallas_src>

<mosaic_0001>
module attributes {stable_mosaic.version = 11 : i64} {
  func.func @kernel(%arg0: memref<16x1xi32, #tpu.memory_space<vmem>>, %arg1: memref<32x1024xf32, #tpu.memory_space<vmem>>, %arg2: memref<128x512xf32, #tpu.memory_space<vmem>>, %arg3: memref<128x128xf32, #tpu.memory_space<vmem>>, %arg4: memref<1x128xf32, #tpu.memory_space<vmem>>, %arg5: memref<16x128xf32, #tpu.memory_space<vmem>>) attributes {dimension_semantics = [], scalar_prefetch = 0 : i64, scratch_operands = 0 : i64, tpu.core_type = #tpu.core_type<tc>} {
    %c0 = arith.constant 0 : index
    %c0_0 = arith.constant 0 : index
    %0 = vector.load %arg0[%c0, %c0_0] : memref<16x1xi32, #tpu.memory_space<vmem>>, vector<16x1xi32>
    %1 = tpu.iota {dimensions = array<i32: 1>} : vector<16x32xi32>
    %2 = vector.broadcast %0 : vector<16x1xi32> to vector<16x32xi32>
    %3 = arith.cmpi eq, %2, %1 : vector<16x32xi32>
    %4 = arith.extui %3 : vector<16x32xi1> to vector<16x32xi32>
    %5 = arith.sitofp %4 : vector<16x32xi32> to vector<16x32xf32>
    %c0_1 = arith.constant 0 : index
    %c0_2 = arith.constant 0 : index
    %6 = vector.load %arg1[%c0_1, %c0_2] : memref<32x1024xf32, #tpu.memory_space<vmem>>, vector<32x1024xf32>
    %cst = arith.constant dense<0.000000e+00> : vector<16x1024xf32>
    %7 = tpu.matmul %5, %6, %cst {dimension_numbers = #tpu.dot_dimension_numbers<[1], [0], [0], [1], [0, 0, 1, 1], [], []>} : vector<16x32xf32>, vector<32x1024xf32>, vector<16x1024xf32> -> vector<16x1024xf32>
    %8 = vector.extract_strided_slice %7 {offsets = [0, 0], sizes = [16, 512], strides = [1, 1]} : vector<16x1024xf32> to vector<16x512xf32>
    %9 = vector.extract_strided_slice %7 {offsets = [0, 512], sizes = [16, 512], strides = [1, 1]} : vector<16x1024xf32> to vector<16x512xf32>
    %cst_3 = arith.constant 0.000000e+00 : f32
    %10 = vector.broadcast %cst_3 : f32 to vector<2x128xf32>
    %cst_4 = arith.constant 0.000000e+00 : f32
    %11 = vector.broadcast %cst_4 : f32 to vector<2x128xf32>
    %12 = vector.extract_strided_slice %8 {offsets = [0, 0], sizes = [2, 512], strides = [1, 1]} : vector<16x512xf32> to vector<2x512xf32>
    %13 = vector.extract_strided_slice %9 {offsets = [14, 0], sizes = [2, 512], strides = [1, 1]} : vector<16x512xf32> to vector<2x512xf32>
    %14 = arith.addf %12, %13 : vector<2x512xf32>
    %c0_5 = arith.constant 0 : index
    %c0_6 = arith.constant 0 : index
    %15 = vector.load %arg2[%c0_5, %c0_6] : memref<128x512xf32, #tpu.memory_space<vmem>>, vector<128x512xf32>
    %cst_7 = arith.constant dense<0.000000e+00> : vector<2x512xf32>
    %16 = tpu.matmul %10, %15, %cst_7 {dimension_numbers = #tpu.dot_dimension_numbers<[1], [0], [0], [1], [0, 0, 1, 1], [], []>} : vector<2x128xf32>, vector<128x512xf32>, vector<2x512xf32> -> vector<2x512xf32>
    %17 = arith.addf %14, %16 : vector<2x512xf32>
    %18 = vector.extract_strided_slice %17 {offsets = [0, 0], sizes = [2, 128], strides = [1, 1]} : vector<2x512xf32> to vector<2x128xf32>
    %19 = arith.negf %18 : vector<2x128xf32>
    %20 = math.exp %19 : vector<2x128xf32>
    %cst_8 = arith.constant 1.000000e+00 : f32
    %21 = vector.broadcast %cst_8 : f32 to vector<2x128xf32>
    %22 = arith.addf %21, %20 : vector<2x128xf32>
    %23 = arith.divf %21, %22 : vector<2x128xf32>
    %24 = vector.extract_strided_slice %17 {offsets = [0, 128], sizes = [2, 128], strides = [1, 1]} : vector<2x512xf32> to vector<2x128xf32>
    %25 = arith.negf %24 : vector<2x128xf32>
    %26 = math.exp %25 : vector<2x128xf32>
    %cst_9 = arith.constant 1.000000e+00 : f32
    %27 = vector.broadcast %cst_9 : f32 to vector<2x128xf32>
    %28 = arith.addf %27, %26 : vector<2x128xf32>
    %29 = arith.divf %27, %28 : vector<2x128xf32>
    %30 = vector.extract_strided_slice %17 {offsets = [0, 256], sizes = [2, 128], strides = [1, 1]} : vector<2x512xf32> to vector<2x128xf32>
    %31 = math.tanh %30 : vector<2x128xf32>
    %32 = vector.extract_strided_slice %17 {offsets = [0, 384], sizes = [2, 128], strides = [1, 1]} : vector<2x512xf32> to vector<2x128xf32>
    %33 = arith.negf %32 : vector<2x128xf32>
    %34 = math.exp %33 : vector<2x128xf32>
    %cst_10 = arith.constant 1.000000e+00 : f32
    %35 = vector.broadcast %cst_10 : f32 to vector<2x128xf32>
    %36 = arith.addf %35, %34 : vector<2x128xf32>
    %37 = arith.divf %35, %36 : vector<2x128xf32>
    %38 = arith.mulf %29, %11 : vector<2x128xf32>
    %39 = arith.mulf %23, %31 : vector<2x128xf32>
    %40 = arith.addf %38, %39 : vector<2x128xf32>
    %41 = math.tanh %40 : vector<2x128xf32>
    %42 = arith.mulf %37, %41 : vector<2x128xf32>
    %43 = vector.extract_strided_slice %8 {offsets = [2, 0], sizes = [2, 512], strides = [1, 1]} : vector<16x512xf32> to vector<2x512xf32>
    %44 = vector.extract_strided_slice %9 {offsets = [12, 0], sizes = [2, 512], strides = [1, 1]} : vector<16x512xf32> to vector<2x512xf32>
    %45 = arith.addf %43, %44 : vector<2x512xf32>
    %c0_11 = arith.constant 0 : index
    %c0_12 = arith.constant 0 : index
    %46 = vector.load %arg2[%c0_11, %c0_12] : memref<128x512xf32, #tpu.memory_space<vmem>>, vector<128x512xf32>
    %cst_13 = arith.constant dense<0.000000e+00> : vector<2x512xf32>
    %47 = tpu.matmul %42, %46, %cst_13 {dimension_numbers = #tpu.dot_dimension_numbers<[1], [0], [0], [1], [0, 0, 1, 1], [], []>} : vector<2x128xf32>, vector<128x512xf32>, vector<2x512xf32> -> vector<2x512xf32>
    %48 = arith.addf %45, %47 : vector<2x512xf32>
    %49 = vector.extract_strided_slice %48 {offsets = [0, 0], sizes = [2, 128], strides = [1, 1]} : vector<2x512xf32> to vector<2x128xf32>
    %50 = arith.negf %49 : vector<2x128xf32>
    %51 = math.exp %50 : vector<2x128xf32>
    %cst_14 = arith.constant 1.000000e+00 : f32
    %52 = vector.broadcast %cst_14 : f32 to vector<2x128xf32>
    %53 = arith.addf %52, %51 : vector<2x128xf32>
    %54 = arith.divf %52, %53 : vector<2x128xf32>
    %55 = vector.extract_strided_slice %48 {offsets = [0, 128], sizes = [2, 128], strides = [1, 1]} : vector<2x512xf32> to vector<2x128xf32>
    %56 = arith.negf %55 : vector<2x128xf32>
    %57 = math.exp %56 : vector<2x128xf32>
    %cst_15 = arith.constant 1.000000e+00 : f32
    %58 = vector.broadcast %cst_15 : f32 to vector<2x128xf32>
    %59 = arith.addf %58, %57 : vector<2x128xf32>
    %60 = arith.divf %58, %59 : vector<2x128xf32>
    %61 = vector.extract_strided_slice %48 {offsets = [0, 256], sizes = [2, 128], strides = [1, 1]} : vector<2x512xf32> to vector<2x128xf32>
    %62 = math.tanh %61 : vector<2x128xf32>
    %63 = vector.extract_strided_slice %48 {offsets = [0, 384], sizes = [2, 128], strides = [1, 1]} : vector<2x512xf32> to vector<2x128xf32>
    %64 = arith.negf %63 : vector<2x128xf32>
    %65 = math.exp %64 : vector<2x128xf32>
    %cst_16 = arith.constant 1.000000e+00 : f32
    %66 = vector.broadcast %cst_16 : f32 to vector<2x128xf32>
    %67 = arith.addf %66, %65 : vector<2x128xf32>
    %68 = arith.divf %66, %67 : vector<2x128xf32>
    %69 = arith.mulf %60, %40 : vector<2x128xf32>
    %70 = arith.mulf %54, %62 : vector<2x128xf32>
    %71 = arith.addf %69, %70 : vector<2x128xf32>
    %72 = math.tanh %71 : vector<2x128xf32>
    %73 = arith.mulf %68, %72 : vector<2x128xf32>
    %74 = vector.extract_strided_slice %8 {offsets = [4, 0], sizes = [2, 512], strides = [1, 1]} : vector<16x512xf32> to vector<2x512xf32>
    %75 = vector.extract_strided_slice %9 {offsets = [10, 0], sizes = [2, 512], strides = [1, 1]} : vector<16x512xf32> to vector<2x512xf32>
    %76 = arith.addf %74, %75 : vector<2x512xf32>
    %c0_17 = arith.constant 0 : index
    %c0_18 = arith.constant 0 : index
    %77 = vector.load %arg2[%c0_17, %c0_18] : memref<128x512xf32, #tpu.memory_space<vmem>>, vector<128x512xf32>
    %cst_19 = arith.constant dense<0.000000e+00> : vector<2x512xf32>
    %78 = tpu.matmul %73, %77, %cst_19 {dimension_numbers = #tpu.dot_dimension_numbers<[1], [0], [0], [1], [0, 0, 1, 1], [], []>} : vector<2x128xf32>, vector<128x512xf32>, vector<2x512xf32> -> vector<2x512xf32>
    %79 = arith.addf %76, %78 : vector<2x512xf32>
    %80 = vector.extract_strided_slice %79 {offsets = [0, 0], sizes = [2, 128], strides = [1, 1]} : vector<2x512xf32> to vector<2x128xf32>
    %81 = arith.negf %80 : vector<2x128xf32>
    %82 = math.exp %81 : vector<2x128xf32>
    %cst_20 = arith.constant 1.000000e+00 : f32
    %83 = vector.broadcast %cst_20 : f32 to vector<2x128xf32>
    %84 = arith.addf %83, %82 : vector<2x128xf32>
    %85 = arith.divf %83, %84 : vector<2x128xf32>
    %86 = vector.extract_strided_slice %79 {offsets = [0, 128], sizes = [2, 128], strides = [1, 1]} : vector<2x512xf32> to vector<2x128xf32>
    %87 = arith.negf %86 : vector<2x128xf32>
    %88 = math.exp %87 : vector<2x128xf32>
    %cst_21 = arith.constant 1.000000e+00 : f32
    %89 = vector.broadcast %cst_21 : f32 to vector<2x128xf32>
    %90 = arith.addf %89, %88 : vector<2x128xf32>
    %91 = arith.divf %89, %90 : vector<2x128xf32>
    %92 = vector.extract_strided_slice %79 {offsets = [0, 256], sizes = [2, 128], strides = [1, 1]} : vector<2x512xf32> to vector<2x128xf32>
    %93 = math.tanh %92 : vector<2x128xf32>
    %94 = vector.extract_strided_slice %79 {offsets = [0, 384], sizes = [2, 128], strides = [1, 1]} : vector<2x512xf32> to vector<2x128xf32>
    %95 = arith.negf %94 : vector<2x128xf32>
    %96 = math.exp %95 : vector<2x128xf32>
    %cst_22 = arith.constant 1.000000e+00 : f32
    %97 = vector.broadcast %cst_22 : f32 to vector<2x128xf32>
    %98 = arith.addf %97, %96 : vector<2x128xf32>
    %99 = arith.divf %97, %98 : vector<2x128xf32>
    %100 = arith.mulf %91, %71 : vector<2x128xf32>
    %101 = arith.mulf %85, %93 : vector<2x128xf32>
    %102 = arith.addf %100, %101 : vector<2x128xf32>
    %103 = math.tanh %102 : vector<2x128xf32>
    %104 = arith.mulf %99, %103 : vector<2x128xf32>
    %105 = vector.extract_strided_slice %8 {offsets = [6, 0], sizes = [2, 512], strides = [1, 1]} : vector<16x512xf32> to vector<2x512xf32>
    %106 = vector.extract_strided_slice %9 {offsets = [8, 0], sizes = [2, 512], strides = [1, 1]} : vector<16x512xf32> to vector<2x512xf32>
    %107 = arith.addf %105, %106 : vector<2x512xf32>
    %c0_23 = arith.constant 0 : index
    %c0_24 = arith.constant 0 : index
    %108 = vector.load %arg2[%c0_23, %c0_24] : memref<128x512xf32, #tpu.memory_space<vmem>>, vector<128x512xf32>
    %cst_25 = arith.constant dense<0.000000e+00> : vector<2x512xf32>
    %109 = tpu.matmul %104, %108, %cst_25 {dimension_numbers = #tpu.dot_dimension_numbers<[1], [0], [0], [1], [0, 0, 1, 1], [], []>} : vector<2x128xf32>, vector<128x512xf32>, vector<2x512xf32> -> vector<2x512xf32>
    %110 = arith.addf %107, %109 : vector<2x512xf32>
    %111 = vector.extract_strided_slice %110 {offsets = [0, 0], sizes = [2, 128], strides = [1, 1]} : vector<2x512xf32> to vector<2x128xf32>
    %112 = arith.negf %111 : vector<2x128xf32>
    %113 = math.exp %112 : vector<2x128xf32>
    %cst_26 = arith.constant 1.000000e+00 : f32
    %114 = vector.broadcast %cst_26 : f32 to vector<2x128xf32>
    %115 = arith.addf %114, %113 : vector<2x128xf32>
    %116 = arith.divf %114, %115 : vector<2x128xf32>
    %117 = vector.extract_strided_slice %110 {offsets = [0, 128], sizes = [2, 128], strides = [1, 1]} : vector<2x512xf32> to vector<2x128xf32>
    %118 = arith.negf %117 : vector<2x128xf32>
    %119 = math.exp %118 : vector<2x128xf32>
    %cst_27 = arith.constant 1.000000e+00 : f32
    %120 = vector.broadcast %cst_27 : f32 to vector<2x128xf32>
    %121 = arith.addf %120, %119 : vector<2x128xf32>
    %122 = arith.divf %120, %121 : vector<2x128xf32>
    %123 = vector.extract_strided_slice %110 {offsets = [0, 256], sizes = [2, 128], strides = [1, 1]} : vector<2x512xf32> to vector<2x128xf32>
    %124 = math.tanh %123 : vector<2x128xf32>
    %125 = vector.extract_strided_slice %110 {offsets = [0, 384], sizes = [2, 128], strides = [1, 1]} : vector<2x512xf32> to vector<2x128xf32>
    %126 = arith.negf %125 : vector<2x128xf32>
    %127 = math.exp %126 : vector<2x128xf32>
    %cst_28 = arith.constant 1.000000e+00 : f32
    %128 = vector.broadcast %cst_28 : f32 to vector<2x128xf32>
    %129 = arith.addf %128, %127 : vector<2x128xf32>
    %130 = arith.divf %128, %129 : vector<2x128xf32>
    %131 = arith.mulf %122, %102 : vector<2x128xf32>
    %132 = arith.mulf %116, %124 : vector<2x128xf32>
    %133 = arith.addf %131, %132 : vector<2x128xf32>
    %134 = math.tanh %133 : vector<2x128xf32>
    %135 = arith.mulf %130, %134 : vector<2x128xf32>
    %136 = vector.extract_strided_slice %8 {offsets = [8, 0], sizes = [2, 512], strides = [1, 1]} : vector<16x512xf32> to vector<2x512xf32>
    %137 = vector.extract_strided_slice %9 {offsets = [6, 0], sizes = [2, 512], strides = [1, 1]} : vector<16x512xf32> to vector<2x512xf32>
    %138 = arith.addf %136, %137 : vector<2x512xf32>
    %c0_29 = arith.constant 0 : index
    %c0_30 = arith.constant 0 : index
    %139 = vector.load %arg2[%c0_29, %c0_30] : memref<128x512xf32, #tpu.memory_space<vmem>>, vector<128x512xf32>
    %cst_31 = arith.constant dense<0.000000e+00> : vector<2x512xf32>
    %140 = tpu.matmul %135, %139, %cst_31 {dimension_numbers = #tpu.dot_dimension_numbers<[1], [0], [0], [1], [0, 0, 1, 1], [], []>} : vector<2x128xf32>, vector<128x512xf32>, vector<2x512xf32> -> vector<2x512xf32>
    %141 = arith.addf %138, %140 : vector<2x512xf32>
    %142 = vector.extract_strided_slice %141 {offsets = [0, 0], sizes = [2, 128], strides = [1, 1]} : vector<2x512xf32> to vector<2x128xf32>
    %143 = arith.negf %142 : vector<2x128xf32>
    %144 = math.exp %143 : vector<2x128xf32>
    %cst_32 = arith.constant 1.000000e+00 : f32
    %145 = vector.broadcast %cst_32 : f32 to vector<2x128xf32>
    %146 = arith.addf %145, %144 : vector<2x128xf32>
    %147 = arith.divf %145, %146 : vector<2x128xf32>
    %148 = vector.extract_strided_slice %141 {offsets = [0, 128], sizes = [2, 128], strides = [1, 1]} : vector<2x512xf32> to vector<2x128xf32>
    %149 = arith.negf %148 : vector<2x128xf32>
    %150 = math.exp %149 : vector<2x128xf32>
    %cst_33 = arith.constant 1.000000e+00 : f32
    %151 = vector.broadcast %cst_33 : f32 to vector<2x128xf32>
    %152 = arith.addf %151, %150 : vector<2x128xf32>
    %153 = arith.divf %151, %152 : vector<2x128xf32>
    %154 = vector.extract_strided_slice %141 {offsets = [0, 256], sizes = [2, 128], strides = [1, 1]} : vector<2x512xf32> to vector<2x128xf32>
    %155 = math.tanh %154 : vector<2x128xf32>
    %156 = vector.extract_strided_slice %141 {offsets = [0, 384], sizes = [2, 128], strides = [1, 1]} : vector<2x512xf32> to vector<2x128xf32>
    %157 = arith.negf %156 : vector<2x128xf32>
    %158 = math.exp %157 : vector<2x128xf32>
    %cst_34 = arith.constant 1.000000e+00 : f32
    %159 = vector.broadcast %cst_34 : f32 to vector<2x128xf32>
    %160 = arith.addf %159, %158 : vector<2x128xf32>
    %161 = arith.divf %159, %160 : vector<2x128xf32>
    %162 = arith.mulf %153, %133 : vector<2x128xf32>
    %163 = arith.mulf %147, %155 : vector<2x128xf32>
    %164 = arith.addf %162, %163 : vector<2x128xf32>
    %165 = math.tanh %164 : vector<2x128xf32>
    %166 = arith.mulf %161, %165 : vector<2x128xf32>
    %167 = vector.extract_strided_slice %8 {offsets = [10, 0], sizes = [2, 512], strides = [1, 1]} : vector<16x512xf32> to vector<2x512xf32>
    %168 = vector.extract_strided_slice %9 {offsets = [4, 0], sizes = [2, 512], strides = [1, 1]} : vector<16x512xf32> to vector<2x512xf32>
    %169 = arith.addf %167, %168 : vector<2x512xf32>
    %c0_35 = arith.constant 0 : index
    %c0_36 = arith.constant 0 : index
    %170 = vector.load %arg2[%c0_35, %c0_36] : memref<128x512xf32, #tpu.memory_space<vmem>>, vector<128x512xf32>
    %cst_37 = arith.constant dense<0.000000e+00> : vector<2x512xf32>
    %171 = tpu.matmul %166, %170, %cst_37 {dimension_numbers = #tpu.dot_dimension_numbers<[1], [0], [0], [1], [0, 0, 1, 1], [], []>} : vector<2x128xf32>, vector<128x512xf32>, vector<2x512xf32> -> vector<2x512xf32>
    %172 = arith.addf %169, %171 : vector<2x512xf32>
    %173 = vector.extract_strided_slice %172 {offsets = [0, 0], sizes = [2, 128], strides = [1, 1]} : vector<2x512xf32> to vector<2x128xf32>
    %174 = arith.negf %173 : vector<2x128xf32>
    %175 = math.exp %174 : vector<2x128xf32>
    %cst_38 = arith.constant 1.000000e+00 : f32
    %176 = vector.broadcast %cst_38 : f32 to vector<2x128xf32>
    %177 = arith.addf %176, %175 : vector<2x128xf32>
    %178 = arith.divf %176, %177 : vector<2x128xf32>
    %179 = vector.extract_strided_slice %172 {offsets = [0, 128], sizes = [2, 128], strides = [1, 1]} : vector<2x512xf32> to vector<2x128xf32>
    %180 = arith.negf %179 : vector<2x128xf32>
    %181 = math.exp %180 : vector<2x128xf32>
    %cst_39 = arith.constant 1.000000e+00 : f32
    %182 = vector.broadcast %cst_39 : f32 to vector<2x128xf32>
    %183 = arith.addf %182, %181 : vector<2x128xf32>
    %184 = arith.divf %182, %183 : vector<2x128xf32>
    %185 = vector.extract_strided_slice %172 {offsets = [0, 256], sizes = [2, 128], strides = [1, 1]} : vector<2x512xf32> to vector<2x128xf32>
    %186 = math.tanh %185 : vector<2x128xf32>
    %187 = vector.extract_strided_slice %172 {offsets = [0, 384], sizes = [2, 128], strides = [1, 1]} : vector<2x512xf32> to vector<2x128xf32>
    %188 = arith.negf %187 : vector<2x128xf32>
    %189 = math.exp %188 : vector<2x128xf32>
    %cst_40 = arith.constant 1.000000e+00 : f32
    %190 = vector.broadcast %cst_40 : f32 to vector<2x128xf32>
    %191 = arith.addf %190, %189 : vector<2x128xf32>
    %192 = arith.divf %190, %191 : vector<2x128xf32>
    %193 = arith.mulf %184, %164 : vector<2x128xf32>
    %194 = arith.mulf %178, %186 : vector<2x128xf32>
    %195 = arith.addf %193, %194 : vector<2x128xf32>
    %196 = math.tanh %195 : vector<2x128xf32>
    %197 = arith.mulf %192, %196 : vector<2x128xf32>
    %198 = vector.extract_strided_slice %8 {offsets = [12, 0], sizes = [2, 512], strides = [1, 1]} : vector<16x512xf32> to vector<2x512xf32>
    %199 = vector.extract_strided_slice %9 {offsets = [2, 0], sizes = [2, 512], strides = [1, 1]} : vector<16x512xf32> to vector<2x512xf32>
    %200 = arith.addf %198, %199 : vector<2x512xf32>
    %c0_41 = arith.constant 0 : index
    %c0_42 = arith.constant 0 : index
    %201 = vector.load %arg2[%c0_41, %c0_42] : memref<128x512xf32, #tpu.memory_space<vmem>>, vector<128x512xf32>
    %cst_43 = arith.constant dense<0.000000e+00> : vector<2x512xf32>
    %202 = tpu.matmul %197, %201, %cst_43 {dimension_numbers = #tpu.dot_dimension_numbers<[1], [0], [0], [1], [0, 0, 1, 1], [], []>} : vector<2x128xf32>, vector<128x512xf32>, vector<2x512xf32> -> vector<2x512xf32>
    %203 = arith.addf %200, %202 : vector<2x512xf32>
    %204 = vector.extract_strided_slice %203 {offsets = [0, 0], sizes = [2, 128], strides = [1, 1]} : vector<2x512xf32> to vector<2x128xf32>
    %205 = arith.negf %204 : vector<2x128xf32>
    %206 = math.exp %205 : vector<2x128xf32>
    %cst_44 = arith.constant 1.000000e+00 : f32
    %207 = vector.broadcast %cst_44 : f32 to vector<2x128xf32>
    %208 = arith.addf %207, %206 : vector<2x128xf32>
    %209 = arith.divf %207, %208 : vector<2x128xf32>
    %210 = vector.extract_strided_slice %203 {offsets = [0, 128], sizes = [2, 128], strides = [1, 1]} : vector<2x512xf32> to vector<2x128xf32>
    %211 = arith.negf %210 : vector<2x128xf32>
    %212 = math.exp %211 : vector<2x128xf32>
    %cst_45 = arith.constant 1.000000e+00 : f32
    %213 = vector.broadcast %cst_45 : f32 to vector<2x128xf32>
    %214 = arith.addf %213, %212 : vector<2x128xf32>
    %215 = arith.divf %213, %214 : vector<2x128xf32>
    %216 = vector.extract_strided_slice %203 {offsets = [0, 256], sizes = [2, 128], strides = [1, 1]} : vector<2x512xf32> to vector<2x128xf32>
    %217 = math.tanh %216 : vector<2x128xf32>
    %218 = vector.extract_strided_slice %203 {offsets = [0, 384], sizes = [2, 128], strides = [1, 1]} : vector<2x512xf32> to vector<2x128xf32>
    %219 = arith.negf %218 : vector<2x128xf32>
    %220 = math.exp %219 : vector<2x128xf32>
    %cst_46 = arith.constant 1.000000e+00 : f32
    %221 = vector.broadcast %cst_46 : f32 to vector<2x128xf32>
    %222 = arith.addf %221, %220 : vector<2x128xf32>
    %223 = arith.divf %221, %222 : vector<2x128xf32>
    %224 = arith.mulf %215, %195 : vector<2x128xf32>
    %225 = arith.mulf %209, %217 : vector<2x128xf32>
    %226 = arith.addf %224, %225 : vector<2x128xf32>
    %227 = math.tanh %226 : vector<2x128xf32>
    %228 = arith.mulf %223, %227 : vector<2x128xf32>
    %229 = vector.extract_strided_slice %8 {offsets = [14, 0], sizes = [2, 512], strides = [1, 1]} : vector<16x512xf32> to vector<2x512xf32>
    %230 = vector.extract_strided_slice %9 {offsets = [0, 0], sizes = [2, 512], strides = [1, 1]} : vector<16x512xf32> to vector<2x512xf32>
    %231 = arith.addf %229, %230 : vector<2x512xf32>
    %c0_47 = arith.constant 0 : index
    %c0_48 = arith.constant 0 : index
    %232 = vector.load %arg2[%c0_47, %c0_48] : memref<128x512xf32, #tpu.memory_space<vmem>>, vector<128x512xf32>
    %cst_49 = arith.constant dense<0.000000e+00> : vector<2x512xf32>
    %233 = tpu.matmul %228, %232, %cst_49 {dimension_numbers = #tpu.dot_dimension_numbers<[1], [0], [0], [1], [0, 0, 1, 1], [], []>} : vector<2x128xf32>, vector<128x512xf32>, vector<2x512xf32> -> vector<2x512xf32>
    %234 = arith.addf %231, %233 : vector<2x512xf32>
    %235 = vector.extract_strided_slice %234 {offsets = [0, 0], sizes = [2, 128], strides = [1, 1]} : vector<2x512xf32> to vector<2x128xf32>
    %236 = arith.negf %235 : vector<2x128xf32>
    %237 = math.exp %236 : vector<2x128xf32>
    %cst_50 = arith.constant 1.000000e+00 : f32
    %238 = vector.broadcast %cst_50 : f32 to vector<2x128xf32>
    %239 = arith.addf %238, %237 : vector<2x128xf32>
    %240 = arith.divf %238, %239 : vector<2x128xf32>
    %241 = vector.extract_strided_slice %234 {offsets = [0, 128], sizes = [2, 128], strides = [1, 1]} : vector<2x512xf32> to vector<2x128xf32>
    %242 = arith.negf %241 : vector<2x128xf32>
    %243 = math.exp %242 : vector<2x128xf32>
    %cst_51 = arith.constant 1.000000e+00 : f32
    %244 = vector.broadcast %cst_51 : f32 to vector<2x128xf32>
    %245 = arith.addf %244, %243 : vector<2x128xf32>
    %246 = arith.divf %244, %245 : vector<2x128xf32>
    %247 = vector.extract_strided_slice %234 {offsets = [0, 256], sizes = [2, 128], strides = [1, 1]} : vector<2x512xf32> to vector<2x128xf32>
    %248 = math.tanh %247 : vector<2x128xf32>
    %249 = vector.extract_strided_slice %234 {offsets = [0, 384], sizes = [2, 128], strides = [1, 1]} : vector<2x512xf32> to vector<2x128xf32>
    %250 = arith.negf %249 : vector<2x128xf32>
    %251 = math.exp %250 : vector<2x128xf32>
    %cst_52 = arith.constant 1.000000e+00 : f32
    %252 = vector.broadcast %cst_52 : f32 to vector<2x128xf32>
    %253 = arith.addf %252, %251 : vector<2x128xf32>
    %254 = arith.divf %252, %253 : vector<2x128xf32>
    %255 = arith.mulf %246, %226 : vector<2x128xf32>
    %256 = arith.mulf %240, %248 : vector<2x128xf32>
    %257 = arith.addf %255, %256 : vector<2x128xf32>
    %258 = math.tanh %257 : vector<2x128xf32>
    %259 = arith.mulf %254, %258 : vector<2x128xf32>
    %260 = tpu.iota {dimensions = array<i32: 1>} : vector<2x128xi32>
    %c64_i32 = arith.constant 64 : i32
    %261 = vector.broadcast %c64_i32 : i32 to vector<2x128xi32>
    %262 = arith.cmpi slt, %260, %261 : vector<2x128xi32>
    %263 = arith.select %262, %42, %259 : vector<2x128xi1>, vector<2x128xf32>
    %c64_i32_53 = arith.constant 64 : i32
    %264 = vector.broadcast %c64_i32_53 : i32 to vector<2x128xi32>
    %265 = arith.cmpi slt, %260, %264 : vector<2x128xi32>
    %266 = arith.select %265, %73, %228 : vector<2x128xi1>, vector<2x128xf32>
    %c64_i32_54 = arith.constant 64 : i32
    %267 = vector.broadcast %c64_i32_54 : i32 to vector<2x128xi32>
    %268 = arith.cmpi slt, %260, %267 : vector<2x128xi32>
    %269 = arith.select %268, %104, %197 : vector<2x128xi1>, vector<2x128xf32>
    %c64_i32_55 = arith.constant 64 : i32
    %270 = vector.broadcast %c64_i32_55 : i32 to vector<2x128xi32>
    %271 = arith.cmpi slt, %260, %270 : vector<2x128xi32>
    %272 = arith.select %271, %135, %166 : vector<2x128xi1>, vector<2x128xf32>
    %c64_i32_56 = arith.constant 64 : i32
    %273 = vector.broadcast %c64_i32_56 : i32 to vector<2x128xi32>
    %274 = arith.cmpi slt, %260, %273 : vector<2x128xi32>
    %275 = arith.select %274, %166, %135 : vector<2x128xi1>, vector<2x128xf32>
    %c64_i32_57 = arith.constant 64 : i32
    %276 = vector.broadcast %c64_i32_57 : i32 to vector<2x128xi32>
    %277 = arith.cmpi slt, %260, %276 : vector<2x128xi32>
    %278 = arith.select %277, %197, %104 : vector<2x128xi1>, vector<2x128xf32>
    %c64_i32_58 = arith.constant 64 : i32
    %279 = vector.broadcast %c64_i32_58 : i32 to vector<2x128xi32>
    %280 = arith.cmpi slt, %260, %279 : vector<2x128xi32>
    %281 = arith.select %280, %228, %73 : vector<2x128xi1>, vector<2x128xf32>
    %c64_i32_59 = arith.constant 64 : i32
    %282 = vector.broadcast %c64_i32_59 : i32 to vector<2x128xi32>
    %283 = arith.cmpi slt, %260, %282 : vector<2x128xi32>
    %284 = arith.select %283, %259, %42 : vector<2x128xi1>, vector<2x128xf32>
    %285 = tpu.concatenate %263, %266, %269, %272, %275, %278, %281, %284 in 0 : vector<2x128xf32>, vector<2x128xf32>, vector<2x128xf32>, vector<2x128xf32>, vector<2x128xf32>, vector<2x128xf32>, vector<2x128xf32>, vector<2x128xf32> -> vector<16x128xf32>
    %c0_60 = arith.constant 0 : index
    %c0_61 = arith.constant 0 : index
    %286 = vector.load %arg3[%c0_60, %c0_61] : memref<128x128xf32, #tpu.memory_space<vmem>>, vector<128x128xf32>
    %cst_62 = arith.constant dense<0.000000e+00> : vector<16x128xf32>
    %287 = tpu.matmul %285, %286, %cst_62 {dimension_numbers = #tpu.dot_dimension_numbers<[1], [0], [0], [1], [0, 0, 1, 1], [], []>} : vector<16x128xf32>, vector<128x128xf32>, vector<16x128xf32> -> vector<16x128xf32>
    %c0_63 = arith.constant 0 : index
    %c0_64 = arith.constant 0 : index
    %288 = vector.load %arg4[%c0_63, %c0_64] : memref<1x128xf32, #tpu.memory_space<vmem>>, vector<1x128xf32>
    %289 = vector.broadcast %288 : vector<1x128xf32> to vector<16x128xf32>
    %290 = arith.addf %287, %289 : vector<16x128xf32>
    %c0_65 = arith.constant 0 : index
    %c0_66 = arith.constant 0 : index
    %291 = vector.load %arg5[%c0_65, %c0_66] : memref<16x128xf32, #tpu.memory_space<vmem>>, vector<16x128xf32>
    tpu.vector_store %arg5[%c0_65, %c0_66], %290 {strides = array<i32>} : memref<16x128xf32, #tpu.memory_space<vmem>>, vector<16x128xf32>,
    return
  }
}

</mosaic_0001>

<llo_original>
// kernel: doti_forward.1
$region0: #{doti_forward.1}
  #allocation0 [shape = 'u32[]', space=smem, size = 0x4, offset = 0x4, fixed_abs, tag = 'smem constant byte address 0x4 - core index']
  #allocation1 [shape = 'u32[72,128]{1,0:T(1,128)}', space=vmem, size = 0x9000, scoped, tag = 'internal scratch']
  %s0 = inlined_call_operand.vmem [shape: s32[16,1], index: 0, kind: input, shape index: {}]
  %s1 = inlined_call_operand.hbm [shape: f32[32,1024], index: 1, kind: input, shape index: {}]
  %s2 = inlined_call_operand.hbm [shape: f32[128,512], index: 2, kind: input, shape index: {}]
  %s3 = inlined_call_operand.hbm [shape: f32[128,128], index: 3, kind: input, shape index: {}]
  %s4 = inlined_call_operand.vmem [shape: f32[1,128], index: 4, kind: input, shape index: {}]
  %s5 = inlined_call_operand.vmem [shape: f32[16,128], index: 5, kind: output, shape index: {}]
  %s6 = sld [smem:[#allocation0]]
  $region42: #{doti_forward.1} parent=0
    _
  %s8 = ssub.s32 1, %s6
  %s9 = scalar_select 0, %s8, %s6
  $region1: #{doti_forward.1} parent=0
    #allocation2 [shape = 'u8[131072]{0}', space=vmem, size = 0x20000, scoped, tag = 'input window, operand 1, single buffered']
    #allocation3 [shape = 's32[1]{0}', space=sflag, size = 0x4, scoped, tag = 'scoped memory for doti_forward.1']
    #allocation4 [shape = 'u8[262144]{0}', space=vmem, size = 0x40000, scoped, tag = 'input window, operand 2, single buffered']
    #allocation5 [shape = 's32[1]{0}', space=sflag, size = 0x4, scoped, tag = 'scoped memory for doti_forward.1']
    #allocation6 [shape = 'u8[65536]{0}', space=vmem, size = 0x10000, scoped, tag = 'input window, operand 3, single buffered']
    %10 = vsyncpa [#allocation3], 0
    %11 = vsyncpa [#allocation5], 0
    // Predicated region
    $region2: #{doti_forward.1} parent=1 // pred_check
      _
    $region3: #{doti_forward.1} parent=1 // pred_check_branch
      %13 = sbr.rel (0) target = $region5
    $region4: #{doti_forward.1} parent=1 // pred_region
      _
    $region5: #{doti_forward.1} parent=1 // pred_fallthru
      _
    // Predicated region
    $region6: #{doti_forward.1} parent=1 // pred_check
      _
    $region7: #{doti_forward.1} parent=1 // pred_check_branch
      %15 = sbr.rel (0) target = $region9
    $region8: #{doti_forward.1} parent=1 // pred_region
      %17 = vsyncadd [#allocation3], 0
      %s18 = sshll.u32 %s1, 4
      %s19 = int_to_ptr.hbm [resolvable:$true] %s18
      %s20 = sshll.u32 [#allocation2], 4
      %s21 = int_to_ptr.vmem [resolvable:$true] %s20
      %26 = dma.hbm_to_vmem [thread:$0]  %s19, 4096, %s21, [#allocation3], 1024, 1024, 64
    $region9: #{doti_forward.1} parent=1 // pred_fallthru
      _
    // Predicated region
    $region10: #{doti_forward.1} parent=1 // pred_check
      _
    $region11: #{doti_forward.1} parent=1 // pred_check_branch
      %28 = sbr.rel (0) target = $region13
    $region12: #{doti_forward.1} parent=1 // pred_region
      %30 = vsyncadd [#allocation5], 0
      %s31 = sshll.u32 %s2, 4
      %s32 = int_to_ptr.hbm [resolvable:$true] %s31
      %s33 = sshll.u32 [#allocation4], 4
      %s34 = int_to_ptr.vmem [resolvable:$true] %s33
      %39 = dma.hbm_to_vmem [thread:$0]  %s32, 8192, %s34, [#allocation5], 512, 512, 32
    $region13: #{doti_forward.1} parent=1 // pred_fallthru
      _
    // Predicated region
    $region14: #{doti_forward.1} parent=1 // pred_check
      _
    $region15: #{doti_forward.1} parent=1 // pred_check_branch
      %41 = sbr.rel (0) target = $region17
    $region16: #{doti_forward.1} parent=1 // pred_region
      %43 = vsyncadd [#allocation5], 0
      %s44 = sshll.u32 %s3, 4
      %s45 = int_to_ptr.hbm [resolvable:$true] %s44
      %s46 = sshll.u32 [#allocation6], 4
      %s47 = int_to_ptr.vmem [resolvable:$true] %s46
      %52 = dma.hbm_to_vmem [thread:$0]  %s45, 2048, %s47, [#allocation5], 128, 128, 8
    $region17: #{doti_forward.1} parent=1 // pred_fallthru
      _
    // Predicated region
    $region18: #{doti_forward.1} parent=1 // pred_check
      _
    $region19: #{doti_forward.1} parent=1 // pred_check_branch
      %54 = sbr.rel (0) target = $region21
    $region20: #{doti_forward.1} parent=1 // pred_region
      _
    $region21: #{doti_forward.1} parent=1 // pred_fallthru
      _
    // Predicated region
    $region22: #{doti_forward.1} parent=1 // pred_check
      _
    $region23: #{doti_forward.1} parent=1 // pred_check_branch
      %56 = sbr.rel (0) target = $region25
    $region24: #{doti_forward.1} parent=1 // pred_region
      %58 = dma.done [#allocation3], 4096
    $region25: #{doti_forward.1} parent=1 // pred_fallthru
      _
    // Predicated region
    $region26: #{doti_forward.1} parent=1 // pred_check
      _
    $region27: #{doti_forward.1} parent=1 // pred_check_branch
      %60 = sbr.rel (0) target = $region29
    $region28: #{doti_forward.1} parent=1 // pred_region
      %62 = dma.done [#allocation5], 8192
    $region29: #{doti_forward.1} parent=1 // pred_fallthru
      _
    // Predicated region
    $region30: #{doti_forward.1} parent=1 // pred_check
      _
    $region31: #{doti_forward.1} parent=1 // pred_check_branch
      %64 = sbr.rel (0) target = $region33
    $region32: #{doti_forward.1} parent=1 // pred_region
      %66 = dma.done [#allocation5], 2048
    $region33: #{doti_forward.1} parent=1 // pred_fallthru
      _
    %v67 = vld [vmem:[%s0] sm:$0xff]
    %v68 = vld [vmem:[%s0 + $0x8] sm:$0xff]
    %v69 = vlaneseq
    %v70 = vand.u32 %v69, 127
    %71 = vset.pattern.permute.xlu0 0
    %72 = vperm.xlu0 %71, %v67
    %v73 = vpop.permute.xlu0 %72
    %74 = vset.pattern.permute.xlu0 0
    %75 = vperm.xlu0 %74, %v68
    %v76 = vpop.permute.xlu0 %75
    %vm77 = vcmp.eq.s32.totalorder %v73, %v70
    %vm78 = vcmp.eq.s32.totalorder %v76, %v70
    %v79 = vsel %vm77, 1, 0
    %v80 = vsel %vm78, 1, 0
    %v81 = vcvt.s32.f32 %v79
    %v82 = vcvt.s32.f32 %v80
    %v83 = vld [vmem:[#allocation2] sm:$0xff]
    %v84 = vld [vmem:[#allocation2 + $0x8] sm:$0xff]
    %v85 = vld [vmem:[#allocation2 + $0x10] sm:$0xff]
    %v86 = vld [vmem:[#allocation2 + $0x18] sm:$0xff]
    %v87 = vld [vmem:[#allocation2 + $0x20] sm:$0xff]
    %v88 = vld [vmem:[#allocation2 + $0x28] sm:$0xff]
    %v89 = vld [vmem:[#allocation2 + $0x30] sm:$0xff]
    %v90 = vld [vmem:[#allocation2 + $0x38] sm:$0xff]
    %v91 = vld [vmem:[#allocation2 + $0x40] sm:$0xff]
    %v92 = vld [vmem:[#allocation2 + $0x48] sm:$0xff]
    %v93 = vld [vmem:[#allocation2 + $0x50] sm:$0xff]
    %v94 = vld [vmem:[#allocation2 + $0x58] sm:$0xff]
    %v95 = vld [vmem:[#allocation2 + $0x60] sm:$0xff]
    %v96 = vld [vmem:[#allocation2 + $0x68] sm:$0xff]
    %v97 = vld [vmem:[#allocation2 + $0x70] sm:$0xff]
    %v98 = vld [vmem:[#allocation2 + $0x78] sm:$0xff]
    %v99 = vld [vmem:[#allocation2 + $0x80] sm:$0xff]
    %v100 = vld [vmem:[#allocation2 + $0x88] sm:$0xff]
    %v101 = vld [vmem:[#allocation2 + $0x90] sm:$0xff]
    %v102 = vld [vmem:[#allocation2 + $0x98] sm:$0xff]
    %v103 = vld [vmem:[#allocation2 + $0xa0] sm:$0xff]
    %v104 = vld [vmem:[#allocation2 + $0xa8] sm:$0xff]
    %v105 = vld [vmem:[#allocation2 + $0xb0] sm:$0xff]
    %v106 = vld [vmem:[#allocation2 + $0xb8] sm:$0xff]
    %v107 = vld [vmem:[#allocation2 + $0xc0] sm:$0xff]
    %v108 = vld [vmem:[#allocation2 + $0xc8] sm:$0xff]
    %v109 = vld [vmem:[#allocation2 + $0xd0] sm:$0xff]
    %v110 = vld [vmem:[#allocation2 + $0xd8] sm:$0xff]
    %v111 = vld [vmem:[#allocation2 + $0xe0] sm:$0xff]
    %v112 = vld [vmem:[#allocation2 + $0xe8] sm:$0xff]
    %v113 = vld [vmem:[#allocation2 + $0xf0] sm:$0xff]
    %v114 = vld [vmem:[#allocation2 + $0xf8] sm:$0xff]
    %vm115 = vcmask 261120
    %v117 = vsel %vm115, %v81, 0
    %v120 = vsel %vm115, %v82, 0
    %122 = vmatpush.msra.mxu0 0.0
    %123 = vmatpush.msra.mxu0 0.0
    %124 = vmatpush.msra.mxu0 0.0
    %125 = vmatpush.msra.mxu0 0.0
    %126 = vmatpush.msra.mxu0 0.0
    %127 = vmatpush.msra.mxu0 0.0
    %128 = vmatpush.msra.mxu0 0.0
    %129 = vmatpush.msra.mxu0 0.0
    %130 = vmatpush.msra.mxu0 0.0
    %131 = vmatpush.msra.mxu0 0.0
    %132 = vmatpush.msra.mxu0 0.0
    %133 = vmatpush.msra.mxu0 0.0
    %134 = vmatpush.msra.mxu0 %v107
    %135 = vmatpush.msra.mxu0 %v99
    %136 = vmatpush.msra.mxu0 %v91
    %137 = vmatpush.msra.mxu0 %v83
    %138 = vmatmul.f32.gmra.mxu0 %v117
    %v139 = vpop.f32.mrf.mxu0
    %v140 = vadd.f32 0.0, %v139
    %141 = vmatmul.f32.gmra.mxu0 %v120
    %v142 = vpop.f32.mrf.mxu0
    %v143 = vadd.f32 0.0, %v142
    %144 = vdwg.mxu0
    %145 = vmatpush.msra.mxu0 0.0
    %146 = vmatpush.msra.mxu0 0.0
    %147 = vmatpush.msra.mxu0 0.0
    %148 = vmatpush.msra.mxu0 0.0
    %149 = vmatpush.msra.mxu0 0.0
    %150 = vmatpush.msra.mxu0 0.0
    %151 = vmatpush.msra.mxu0 0.0
    %152 = vmatpush.msra.mxu0 0.0
    %153 = vmatpush.msra.mxu0 0.0
    %154 = vmatpush.msra.mxu0 0.0
    %155 = vmatpush.msra.mxu0 0.0
    %156 = vmatpush.msra.mxu0 0.0
    %157 = vmatpush.msra.mxu0 %v108
    %158 = vmatpush.msra.mxu0 %v100
    %159 = vmatpush.msra.mxu0 %v92
    %160 = vmatpush.msra.mxu0 %v84
    %161 = vmatmul.f32.gmra.mxu0 %v117
    %v162 = vpop.f32.mrf.mxu0
    %v163 = vadd.f32 0.0, %v162
    %164 = vmatmul.f32.gmra.mxu0 %v120
    %v165 = vpop.f32.mrf.mxu0
    %v166 = vadd.f32 0.0, %v165
    %167 = vdwg.mxu0
    %168 = vmatpush.msra.mxu0 0.0
    %169 = vmatpush.msra.mxu0 0.0
    %170 = vmatpush.msra.mxu0 0.0
    %171 = vmatpush.msra.mxu0 0.0
    %172 = vmatpush.msra.mxu0 0.0
    %173 = vmatpush.msra.mxu0 0.0
    %174 = vmatpush.msra.mxu0 0.0
    %175 = vmatpush.msra.mxu0 0.0
    %176 = vmatpush.msra.mxu0 0.0
    %177 = vmatpush.msra.mxu0 0.0
    %178 = vmatpush.msra.mxu0 0.0
    %179 = vmatpush.msra.mxu0 0.0
    %180 = vmatpush.msra.mxu0 %v109
    %181 = vmatpush.msra.mxu0 %v101
    %182 = vmatpush.msra.mxu0 %v93
    %183 = vmatpush.msra.mxu0 %v85
    %184 = vmatmul.f32.gmra.mxu0 %v117
    %v185 = vpop.f32.mrf.mxu0
    %v186 = vadd.f32 0.0, %v185
    %187 = vmatmul.f32.gmra.mxu0 %v120
    %v188 = vpop.f32.mrf.mxu0
    %v189 = vadd.f32 0.0, %v188
    %190 = vdwg.mxu0
    %191 = vmatpush.msra.mxu0 0.0
    %192 = vmatpush.msra.mxu0 0.0
    %193 = vmatpush.msra.mxu0 0.0
    %194 = vmatpush.msra.mxu0 0.0
    %195 = vmatpush.msra.mxu0 0.0
    %196 = vmatpush.msra.mxu0 0.0
    %197 = vmatpush.msra.mxu0 0.0
    %198 = vmatpush.msra.mxu0 0.0
    %199 = vmatpush.msra.mxu0 0.0
    %200 = vmatpush.msra.mxu0 0.0
    %201 = vmatpush.msra.mxu0 0.0
    %202 = vmatpush.msra.mxu0 0.0
    %203 = vmatpush.msra.mxu0 %v110
    %204 = vmatpush.msra.mxu0 %v102
    %205 = vmatpush.msra.mxu0 %v94
    %206 = vmatpush.msra.mxu0 %v86
    %207 = vmatmul.f32.gmra.mxu0 %v117
    %v208 = vpop.f32.mrf.mxu0
    %v209 = vadd.f32 0.0, %v208
    %210 = vmatmul.f32.gmra.mxu0 %v120
    %v211 = vpop.f32.mrf.mxu0
    %v212 = vadd.f32 0.0, %v211
    %213 = vdwg.mxu0
    %214 = vmatpush.msra.mxu0 0.0
    %215 = vmatpush.msra.mxu0 0.0
    %216 = vmatpush.msra.mxu0 0.0
    %217 = vmatpush.msra.mxu0 0.0
    %218 = vmatpush.msra.mxu0 0.0
    %219 = vmatpush.msra.mxu0 0.0
    %220 = vmatpush.msra.mxu0 0.0
    %221 = vmatpush.msra.mxu0 0.0
    %222 = vmatpush.msra.mxu0 0.0
    %223 = vmatpush.msra.mxu0 0.0
    %224 = vmatpush.msra.mxu0 0.0
    %225 = vmatpush.msra.mxu0 0.0
    %226 = vmatpush.msra.mxu0 %v111
    %227 = vmatpush.msra.mxu0 %v103
    %228 = vmatpush.msra.mxu0 %v95
    %229 = vmatpush.msra.mxu0 %v87
    %230 = vmatmul.f32.gmra.mxu0 %v117
    %v231 = vpop.f32.mrf.mxu0
    %v232 = vadd.f32 0.0, %v231
    %233 = vmatmul.f32.gmra.mxu0 %v120
    %v234 = vpop.f32.mrf.mxu0
    %v235 = vadd.f32 0.0, %v234
    %236 = vdwg.mxu0
    %237 = vmatpush.msra.mxu0 0.0
    %238 = vmatpush.msra.mxu0 0.0
    %239 = vmatpush.msra.mxu0 0.0
    %240 = vmatpush.msra.mxu0 0.0
    %241 = vmatpush.msra.mxu0 0.0
    %242 = vmatpush.msra.mxu0 0.0
    %243 = vmatpush.msra.mxu0 0.0
    %244 = vmatpush.msra.mxu0 0.0
    %245 = vmatpush.msra.mxu0 0.0
    %246 = vmatpush.msra.mxu0 0.0
    %247 = vmatpush.msra.mxu0 0.0
    %248 = vmatpush.msra.mxu0 0.0
    %249 = vmatpush.msra.mxu0 %v112
    %250 = vmatpush.msra.mxu0 %v104
    %251 = vmatpush.msra.mxu0 %v96
    %252 = vmatpush.msra.mxu0 %v88
    %253 = vmatmul.f32.gmra.mxu0 %v117
    %v254 = vpop.f32.mrf.mxu0
    %v255 = vadd.f32 0.0, %v254
    %256 = vmatmul.f32.gmra.mxu0 %v120
    %v257 = vpop.f32.mrf.mxu0
    %v258 = vadd.f32 0.0, %v257
    %259 = vdwg.mxu0
    %260 = vmatpush.msra.mxu0 0.0
    %261 = vmatpush.msra.mxu0 0.0
    %262 = vmatpush.msra.mxu0 0.0
    %263 = vmatpush.msra.mxu0 0.0
    %264 = vmatpush.msra.mxu0 0.0
    %265 = vmatpush.msra.mxu0 0.0
    %266 = vmatpush.msra.mxu0 0.0
    %267 = vmatpush.msra.mxu0 0.0
    %268 = vmatpush.msra.mxu0 0.0
    %269 = vmatpush.msra.mxu0 0.0
    %270 = vmatpush.msra.mxu0 0.0
    %271 = vmatpush.msra.mxu0 0.0
    %272 = vmatpush.msra.mxu0 %v113
    %273 = vmatpush.msra.mxu0 %v105
    %274 = vmatpush.msra.mxu0 %v97
    %275 = vmatpush.msra.mxu0 %v89
    %276 = vmatmul.f32.gmra.mxu0 %v117
    %v277 = vpop.f32.mrf.mxu0
    %v278 = vadd.f32 0.0, %v277
    %279 = vmatmul.f32.gmra.mxu0 %v120
    %v280 = vpop.f32.mrf.mxu0
    %v281 = vadd.f32 0.0, %v280
    %282 = vdwg.mxu0
    %283 = vmatpush.msra.mxu0 0.0
    %284 = vmatpush.msra.mxu0 0.0
    %285 = vmatpush.msra.mxu0 0.0
    %286 = vmatpush.msra.mxu0 0.0
    %287 = vmatpush.msra.mxu0 0.0
    %288 = vmatpush.msra.mxu0 0.0
    %289 = vmatpush.msra.mxu0 0.0
    %290 = vmatpush.msra.mxu0 0.0
    %291 = vmatpush.msra.mxu0 0.0
    %292 = vmatpush.msra.mxu0 0.0
    %293 = vmatpush.msra.mxu0 0.0
    %294 = vmatpush.msra.mxu0 0.0
    %295 = vmatpush.msra.mxu0 %v114
    %296 = vmatpush.msra.mxu0 %v106
    %297 = vmatpush.msra.mxu0 %v98
    %298 = vmatpush.msra.mxu0 %v90
    %299 = vmatmul.f32.gmra.mxu0 %v117
    %v300 = vpop.f32.mrf.mxu0
    %v301 = vadd.f32 0.0, %v300
    %302 = vmatmul.f32.gmra.mxu0 %v120
    %v303 = vpop.f32.mrf.mxu0
    %v304 = vadd.f32 0.0, %v303
    %305 = vdwg.mxu0
    %v310 = vrot.slane %v235, 6
    %v311 = vrot.slane %v258, 6
    %v312 = vrot.slane %v281, 6
    %v313 = vrot.slane %v304, 6
    %v318 = vadd.f32 %v140, %v310
    %v319 = vadd.f32 %v163, %v311
    %v320 = vadd.f32 %v186, %v312
    %v321 = vadd.f32 %v209, %v313
    %v322 = vld [vmem:[#allocation4] sm:$0xff]
    %v323 = vld [vmem:[#allocation4 + $0x8] sm:$0xff]
    %v324 = vld [vmem:[#allocation4 + $0x10] sm:$0xff]
    %v325 = vld [vmem:[#allocation4 + $0x18] sm:$0xff]
    %v326 = vld [vmem:[#allocation4 + $0x20] sm:$0xff]
    %v327 = vld [vmem:[#allocation4 + $0x28] sm:$0xff]
    %v328 = vld [vmem:[#allocation4 + $0x30] sm:$0xff]
    %v329 = vld [vmem:[#allocation4 + $0x38] sm:$0xff]
    %v330 = vld [vmem:[#allocation4 + $0x40] sm:$0xff]
    %v331 = vld [vmem:[#allocation4 + $0x48] sm:$0xff]
    %v332 = vld [vmem:[#allocation4 + $0x50] sm:$0xff]
    %v333 = vld [vmem:[#allocation4 + $0x58] sm:$0xff]
    %v334 = vld [vmem:[#allocation4 + $0x60] sm:$0xff]
    %v335 = vld [vmem:[#allocation4 + $0x68] sm:$0xff]
    %v336 = vld [vmem:[#allocation4 + $0x70] sm:$0xff]
    %v337 = vld [vmem:[#allocation4 + $0x78] sm:$0xff]
    %v338 = vld [vmem:[#allocation4 + $0x80] sm:$0xff]
    %v339 = vld [vmem:[#allocation4 + $0x88] sm:$0xff]
    %v340 = vld [vmem:[#allocation4 + $0x90] sm:$0xff]
    %v341 = vld [vmem:[#allocation4 + $0x98] sm:$0xff]
    %v342 = vld [vmem:[#allocation4 + $0xa0] sm:$0xff]
    %v343 = vld [vmem:[#allocation4 + $0xa8] sm:$0xff]
    %v344 = vld [vmem:[#allocation4 + $0xb0] sm:$0xff]
    %v345 = vld [vmem:[#allocation4 + $0xb8] sm:$0xff]
    %v346 = vld [vmem:[#allocation4 + $0xc0] sm:$0xff]
    %v347 = vld [vmem:[#allocation4 + $0xc8] sm:$0xff]
    %v348 = vld [vmem:[#allocation4 + $0xd0] sm:$0xff]
    %v349 = vld [vmem:[#allocation4 + $0xd8] sm:$0xff]
    %v350 = vld [vmem:[#allocation4 + $0xe0] sm:$0xff]
    %v351 = vld [vmem:[#allocation4 + $0xe8] sm:$0xff]
    %v352 = vld [vmem:[#allocation4 + $0xf0] sm:$0xff]
    %v353 = vld [vmem:[#allocation4 + $0xf8] sm:$0xff]
    %v354 = vld [vmem:[#allocation4 + $0x100] sm:$0xff]
    %v355 = vld [vmem:[#allocation4 + $0x108] sm:$0xff]
    %v356 = vld [vmem:[#allocation4 + $0x110] sm:$0xff]
    %v357 = vld [vmem:[#allocation4 + $0x118] sm:$0xff]
    %v358 = vld [vmem:[#allocation4 + $0x120] sm:$0xff]
    %v359 = vld [vmem:[#allocation4 + $0x128] sm:$0xff]
    %v360 = vld [vmem:[#allocation4 + $0x130] sm:$0xff]
    %v361 = vld [vmem:[#allocation4 + $0x138] sm:$0xff]
    %v362 = vld [vmem:[#allocation4 + $0x140] sm:$0xff]
    %v363 = vld [vmem:[#allocation4 + $0x148] sm:$0xff]
    %v364 = vld [vmem:[#allocation4 + $0x150] sm:$0xff]
    %v365 = vld [vmem:[#allocation4 + $0x158] sm:$0xff]
    %v366 = vld [vmem:[#allocation4 + $0x160] sm:$0xff]
    %v367 = vld [vmem:[#allocation4 + $0x168] sm:$0xff]
    %v368 = vld [vmem:[#allocation4 + $0x170] sm:$0xff]
    %v369 = vld [vmem:[#allocation4 + $0x178] sm:$0xff]
    %v370 = vld [vmem:[#allocation4 + $0x180] sm:$0xff]
    %v371 = vld [vmem:[#allocation4 + $0x188] sm:$0xff]
    %v372 = vld [vmem:[#allocation4 + $0x190] sm:$0xff]
    %v373 = vld [vmem:[#allocation4 + $0x198] sm:$0xff]
    %v374 = vld [vmem:[#allocation4 + $0x1a0] sm:$0xff]
    %v375 = vld [vmem:[#allocation4 + $0x1a8] sm:$0xff]
    %v376 = vld [vmem:[#allocation4 + $0x1b0] sm:$0xff]
    %v377 = vld [vmem:[#allocation4 + $0x1b8] sm:$0xff]
    %v378 = vld [vmem:[#allocation4 + $0x1c0] sm:$0xff]
    %v379 = vld [vmem:[#allocation4 + $0x1c8] sm:$0xff]
    %v380 = vld [vmem:[#allocation4 + $0x1d0] sm:$0xff]
    %v381 = vld [vmem:[#allocation4 + $0x1d8] sm:$0xff]
    %v382 = vld [vmem:[#allocation4 + $0x1e0] sm:$0xff]
    %v383 = vld [vmem:[#allocation4 + $0x1e8] sm:$0xff]
    %v384 = vld [vmem:[#allocation4 + $0x1f0] sm:$0xff]
    %v385 = vld [vmem:[#allocation4 + $0x1f8] sm:$0xff]
    %386 = vmatpush.msra.mxu0 %v382
    %387 = vmatpush.msra.mxu0 %v378
    %388 = vmatpush.msra.mxu0 %v374
    %389 = vmatpush.msra.mxu0 %v370
    %390 = vmatpush.msra.mxu0 %v366
    %391 = vmatpush.msra.mxu0 %v362
    %392 = vmatpush.msra.mxu0 %v358
    %393 = vmatpush.msra.mxu0 %v354
    %394 = vmatpush.msra.mxu0 %v350
    %395 = vmatpush.msra.mxu0 %v346
    %396 = vmatpush.msra.mxu0 %v342
    %397 = vmatpush.msra.mxu0 %v338
    %398 = vmatpush.msra.mxu0 %v334
    %399 = vmatpush.msra.mxu0 %v330
    %400 = vmatpush.msra.mxu0 %v326
    %401 = vmatpush.msra.mxu0 %v322
    %402 = vmatmul.f32.gmra.mxu0 0.0
    %v403 = vpop.f32.mrf.mxu0
    %v404 = vadd.f32 0.0, %v403
    %405 = vdwg.mxu0
    %406 = vmatpush.msra.mxu0 %v383
    %407 = vmatpush.msra.mxu0 %v379
    %408 = vmatpush.msra.mxu0 %v375
    %409 = vmatpush.msra.mxu0 %v371
    %410 = vmatpush.msra.mxu0 %v367
    %411 = vmatpush.msra.mxu0 %v363
    %412 = vmatpush.msra.mxu0 %v359
    %413 = vmatpush.msra.mxu0 %v355
    %414 = vmatpush.msra.mxu0 %v351
    %415 = vmatpush.msra.mxu0 %v347
    %416 = vmatpush.msra.mxu0 %v343
    %417 = vmatpush.msra.mxu0 %v339
    %418 = vmatpush.msra.mxu0 %v335
    %419 = vmatpush.msra.mxu0 %v331
    %420 = vmatpush.msra.mxu0 %v327
    %421 = vmatpush.msra.mxu0 %v323
    %422 = vmatmul.f32.gmra.mxu0 0.0
    %v423 = vpop.f32.mrf.mxu0
    %v424 = vadd.f32 0.0, %v423
    %425 = vdwg.mxu0
    %426 = vmatpush.msra.mxu0 %v384
    %427 = vmatpush.msra.mxu0 %v380
    %428 = vmatpush.msra.mxu0 %v376
    %429 = vmatpush.msra.mxu0 %v372
    %430 = vmatpush.msra.mxu0 %v368
    %431 = vmatpush.msra.mxu0 %v364
    %432 = vmatpush.msra.mxu0 %v360
    %433 = vmatpush.msra.mxu0 %v356
    %434 = vmatpush.msra.mxu0 %v352
    %435 = vmatpush.msra.mxu0 %v348
    %436 = vmatpush.msra.mxu0 %v344
    %437 = vmatpush.msra.mxu0 %v340
    %438 = vmatpush.msra.mxu0 %v336
    %439 = vmatpush.msra.mxu0 %v332
    %440 = vmatpush.msra.mxu0 %v328
    %441 = vmatpush.msra.mxu0 %v324
    %442 = vmatmul.f32.gmra.mxu0 0.0
    %v443 = vpop.f32.mrf.mxu0
    %v444 = vadd.f32 0.0, %v443
    %445 = vdwg.mxu0
    %446 = vmatpush.msra.mxu0 %v385
    %447 = vmatpush.msra.mxu0 %v381
    %448 = vmatpush.msra.mxu0 %v377
    %449 = vmatpush.msra.mxu0 %v373
    %450 = vmatpush.msra.mxu0 %v369
    %451 = vmatpush.msra.mxu0 %v365
    %452 = vmatpush.msra.mxu0 %v361
    %453 = vmatpush.msra.mxu0 %v357
    %454 = vmatpush.msra.mxu0 %v353
    %455 = vmatpush.msra.mxu0 %v349
    %456 = vmatpush.msra.mxu0 %v345
    %457 = vmatpush.msra.mxu0 %v341
    %458 = vmatpush.msra.mxu0 %v337
    %459 = vmatpush.msra.mxu0 %v333
    %460 = vmatpush.msra.mxu0 %v329
    %461 = vmatpush.msra.mxu0 %v325
    %462 = vmatmul.f32.gmra.mxu0 0.0
    %v463 = vpop.f32.mrf.mxu0
    %v464 = vadd.f32 0.0, %v463
    %465 = vdwg.mxu0
    %v466 = vadd.f32 %v318, %v404
    %v467 = vadd.f32 %v319, %v424
    %v468 = vadd.f32 %v320, %v444
    %v469 = vadd.f32 %v321, %v464
    %v470 = vxor.u32 %v466, 2147483648
    %v471 = vmul.f32 %v470, 1.442695
    %v472 = vpow.pop %v471
    %v473 = vadd.f32 %v472, 1.0
    %v474 = vrcp.pop %v473
    %v475 = vmul.f32 %v473, %v474
    %v476 = vsub.f32 1.0, %v475
    %v477 = vmul.f32 %v474, %v476
    %v478 = vadd.f32 %v474, %v477
    %vm479 = vweird.f32 %v473
    %vm480 = vweird.f32 %v474
    %vm481 = vmor %vm479, %vm480
    %v482 = vsel %vm481, %v474, %v478
    %v483 = vand.u32 2147483647, %v473
    %vm484 = vcmp.eq.f32.partialorder %v483, 8.507059e+37
    %v485 = vand.u32 %v473, 2147483648
    %v486 = vor.u32 1.1754944e-38, %v485
    %v487 = vsel %vm484, %v486, %v482
    %v488 = vmul.f32 1.0, %v487
    %v489 = vxor.u32 %v467, 2147483648
    %v490 = vmul.f32 %v489, 1.442695
    %v491 = vpow.pop %v490
    %v492 = vadd.f32 %v491, 1.0
    %v493 = vrcp.pop %v492
    %v494 = vmul.f32 %v492, %v493
    %v495 = vsub.f32 1.0, %v494
    %v496 = vmul.f32 %v493, %v495
    %v497 = vadd.f32 %v493, %v496
    %vm498 = vweird.f32 %v492
    %vm499 = vweird.f32 %v493
    %vm500 = vmor %vm498, %vm499
    %v501 = vsel %vm500, %v493, %v497
    %v502 = vand.u32 2147483647, %v492
    %vm503 = vcmp.eq.f32.partialorder %v502, 8.507059e+37
    %v504 = vand.u32 %v492, 2147483648
    %v505 = vor.u32 1.1754944e-38, %v504
    %v506 = vsel %vm503, %v505, %v501
    %v507 = vmul.f32 1.0, %v506
    %v508 = vtanh.pop %v468
    %v509 = vxor.u32 %v469, 2147483648
    %v510 = vmul.f32 %v509, 1.442695
    %v511 = vpow.pop %v510
    %v512 = vadd.f32 %v511, 1.0
    %v513 = vrcp.pop %v512
    %v514 = vmul.f32 %v512, %v513
    %v515 = vsub.f32 1.0, %v514
    %v516 = vmul.f32 %v513, %v515
    %v517 = vadd.f32 %v513, %v516
    %vm518 = vweird.f32 %v512
    %vm519 = vweird.f32 %v513
    %vm520 = vmor %vm518, %vm519
    %v521 = vsel %vm520, %v513, %v517
    %v522 = vand.u32 2147483647, %v512
    %vm523 = vcmp.eq.f32.partialorder %v522, 8.507059e+37
    %v524 = vand.u32 %v512, 2147483648
    %v525 = vor.u32 1.1754944e-38, %v524
    %v526 = vsel %vm523, %v525, %v521
    %v527 = vmul.f32 1.0, %v526
    %v528 = vmul.f32 %v507, 0.0
    %v529 = vmul.f32 %v488, %v508
    %v530 = vadd.f32 %v528, %v529
    %v531 = vtanh.pop %v530
    %v532 = vmul.f32 %v527, %v531
    %v533 = vrot.slane %v235, 2
    %v534 = vrot.slane %v258, 2
    %v535 = vrot.slane %v281, 2
    %v536 = vrot.slane %v304, 2
    %v541 = vadd.f32 %v140, %v533
    %v542 = vadd.f32 %v163, %v534
    %v543 = vadd.f32 %v186, %v535
    %v544 = vadd.f32 %v209, %v536
    %545 = vmatpush.msra.mxu0 %v382
    %546 = vmatpush.msra.mxu0 %v378
    %547 = vmatpush.msra.mxu0 %v374
    %548 = vmatpush.msra.mxu0 %v370
    %549 = vmatpush.msra.mxu0 %v366
    %550 = vmatpush.msra.mxu0 %v362
    %551 = vmatpush.msra.mxu0 %v358
    %552 = vmatpush.msra.mxu0 %v354
    %553 = vmatpush.msra.mxu0 %v350
    %554 = vmatpush.msra.mxu0 %v346
    %555 = vmatpush.msra.mxu0 %v342
    %556 = vmatpush.msra.mxu0 %v338
    %557 = vmatpush.msra.mxu0 %v334
    %558 = vmatpush.msra.mxu0 %v330
    %559 = vmatpush.msra.mxu0 %v326
    %560 = vmatpush.msra.mxu0 %v322
    %561 = vmatmul.f32.gmra.mxu0 %v532
    %v562 = vpop.f32.mrf.mxu0
    %v563 = vadd.f32 0.0, %v562
    %564 = vdwg.mxu0
    %565 = vmatpush.msra.mxu0 %v383
    %566 = vmatpush.msra.mxu0 %v379
    %567 = vmatpush.msra.mxu0 %v375
    %568 = vmatpush.msra.mxu0 %v371
    %569 = vmatpush.msra.mxu0 %v367
    %570 = vmatpush.msra.mxu0 %v363
    %571 = vmatpush.msra.mxu0 %v359
    %572 = vmatpush.msra.mxu0 %v355
    %573 = vmatpush.msra.mxu0 %v351
    %574 = vmatpush.msra.mxu0 %v347
    %575 = vmatpush.msra.mxu0 %v343
    %576 = vmatpush.msra.mxu0 %v339
    %577 = vmatpush.msra.mxu0 %v335
    %578 = vmatpush.msra.mxu0 %v331
    %579 = vmatpush.msra.mxu0 %v327
    %580 = vmatpush.msra.mxu0 %v323
    %581 = vmatmul.f32.gmra.mxu0 %v532
    %v582 = vpop.f32.mrf.mxu0
    %v583 = vadd.f32 0.0, %v582
    %584 = vdwg.mxu0
    %585 = vmatpush.msra.mxu0 %v384
    %586 = vmatpush.msra.mxu0 %v380
    %587 = vmatpush.msra.mxu0 %v376
    %588 = vmatpush.msra.mxu0 %v372
    %589 = vmatpush.msra.mxu0 %v368
    %590 = vmatpush.msra.mxu0 %v364
    %591 = vmatpush.msra.mxu0 %v360
    %592 = vmatpush.msra.mxu0 %v356
    %593 = vmatpush.msra.mxu0 %v352
    %594 = vmatpush.msra.mxu0 %v348
    %595 = vmatpush.msra.mxu0 %v344
    %596 = vmatpush.msra.mxu0 %v340
    %597 = vmatpush.msra.mxu0 %v336
    %598 = vmatpush.msra.mxu0 %v332
    %599 = vmatpush.msra.mxu0 %v328
    %600 = vmatpush.msra.mxu0 %v324
    %601 = vmatmul.f32.gmra.mxu0 %v532
    %v602 = vpop.f32.mrf.mxu0
    %v603 = vadd.f32 0.0, %v602
    %604 = vdwg.mxu0
    %605 = vmatpush.msra.mxu0 %v385
    %606 = vmatpush.msra.mxu0 %v381
    %607 = vmatpush.msra.mxu0 %v377
    %608 = vmatpush.msra.mxu0 %v373
    %609 = vmatpush.msra.mxu0 %v369
    %610 = vmatpush.msra.mxu0 %v365
    %611 = vmatpush.msra.mxu0 %v361
    %612 = vmatpush.msra.mxu0 %v357
    %613 = vmatpush.msra.mxu0 %v353
    %614 = vmatpush.msra.mxu0 %v349
    %615 = vmatpush.msra.mxu0 %v345
    %616 = vmatpush.msra.mxu0 %v341
    %617 = vmatpush.msra.mxu0 %v337
    %618 = vmatpush.msra.mxu0 %v333
    %619 = vmatpush.msra.mxu0 %v329
    %620 = vmatpush.msra.mxu0 %v325
    %621 = vmatmul.f32.gmra.mxu0 %v532
    %v622 = vpop.f32.mrf.mxu0
    %v623 = vadd.f32 0.0, %v622
    %624 = vdwg.mxu0
    %v629 = vrot.slane %v563, 6
    %v630 = vrot.slane %v583, 6
    %v631 = vrot.slane %v603, 6
    %v632 = vrot.slane %v623, 6
    %v637 = vadd.f32 %v541, %v629
    %v638 = vadd.f32 %v542, %v630
    %v639 = vadd.f32 %v543, %v631
    %v640 = vadd.f32 %v544, %v632
    %v641 = vxor.u32 %v637, 2147483648
    %v642 = vmul.f32 %v641, 1.442695
    %v643 = vpow.pop %v642
    %v644 = vadd.f32 %v643, 1.0
    %v645 = vrcp.pop %v644
    %v646 = vmul.f32 %v644, %v645
    %v647 = vsub.f32 1.0, %v646
    %v648 = vmul.f32 %v645, %v647
    %v649 = vadd.f32 %v645, %v648
    %vm650 = vweird.f32 %v644
    %vm651 = vweird.f32 %v645
    %vm652 = vmor %vm650, %vm651
    %v653 = vsel %vm652, %v645, %v649
    %v654 = vand.u32 2147483647, %v644
    %vm655 = vcmp.eq.f32.partialorder %v654, 8.507059e+37
    %v656 = vand.u32 %v644, 2147483648
    %v657 = vor.u32 1.1754944e-38, %v656
    %v658 = vsel %vm655, %v657, %v653
    %v659 = vmul.f32 1.0, %v658
    %v660 = vxor.u32 %v638, 2147483648
    %v661 = vmul.f32 %v660, 1.442695
    %v662 = vpow.pop %v661
    %v663 = vadd.f32 %v662, 1.0
    %v664 = vrcp.pop %v663
    %v665 = vmul.f32 %v663, %v664
    %v666 = vsub.f32 1.0, %v665
    %v667 = vmul.f32 %v664, %v666
    %v668 = vadd.f32 %v664, %v667
    %vm669 = vweird.f32 %v663
    %vm670 = vweird.f32 %v664
    %vm671 = vmor %vm669, %vm670
    %v672 = vsel %vm671, %v664, %v668
    %v673 = vand.u32 2147483647, %v663
    %vm674 = vcmp.eq.f32.partialorder %v673, 8.507059e+37
    %v675 = vand.u32 %v663, 2147483648
    %v676 = vor.u32 1.1754944e-38, %v675
    %v677 = vsel %vm674, %v676, %v672
    %v678 = vmul.f32 1.0, %v677
    %v679 = vtanh.pop %v639
    %v680 = vxor.u32 %v640, 2147483648
    %v681 = vmul.f32 %v680, 1.442695
    %v682 = vpow.pop %v681
    %v683 = vadd.f32 %v682, 1.0
    %v684 = vrcp.pop %v683
    %v685 = vmul.f32 %v683, %v684
    %v686 = vsub.f32 1.0, %v685
    %v687 = vmul.f32 %v684, %v686
    %v688 = vadd.f32 %v684, %v687
    %vm689 = vweird.f32 %v683
    %vm690 = vweird.f32 %v684
    %vm691 = vmor %vm689, %vm690
    %v692 = vsel %vm691, %v684, %v688
    %v693 = vand.u32 2147483647, %v683
    %vm694 = vcmp.eq.f32.partialorder %v693, 8.507059e+37
    %v695 = vand.u32 %v683, 2147483648
    %v696 = vor.u32 1.1754944e-38, %v695
    %v697 = vsel %vm694, %v696, %v692
    %v698 = vmul.f32 1.0, %v697
    %v700 = vrot.slane %v530, 6
    %v702 = vmul.f32 %v678, %v700
    %v703 = vmul.f32 %v659, %v679
    %v704 = vadd.f32 %v702, %v703
    %v705 = vtanh.pop %v704
    %v706 = vmul.f32 %v698, %v705
    %v708 = vrot.slane %v706, 2
    %710 = vmatpush.msra.mxu0 %v382
    %711 = vmatpush.msra.mxu0 %v378
    %712 = vmatpush.msra.mxu0 %v374
    %713 = vmatpush.msra.mxu0 %v370
    %714 = vmatpush.msra.mxu0 %v366
    %715 = vmatpush.msra.mxu0 %v362
    %716 = vmatpush.msra.mxu0 %v358
    %717 = vmatpush.msra.mxu0 %v354
    %718 = vmatpush.msra.mxu0 %v350
    %719 = vmatpush.msra.mxu0 %v346
    %720 = vmatpush.msra.mxu0 %v342
    %721 = vmatpush.msra.mxu0 %v338
    %722 = vmatpush.msra.mxu0 %v334
    %723 = vmatpush.msra.mxu0 %v330
    %724 = vmatpush.msra.mxu0 %v326
    %725 = vmatpush.msra.mxu0 %v322
    %726 = vmatmul.f32.gmra.mxu0 %v708
    %v727 = vpop.f32.mrf.mxu0
    %v728 = vadd.f32 0.0, %v727
    %729 = vdwg.mxu0
    %730 = vmatpush.msra.mxu0 %v383
    %731 = vmatpush.msra.mxu0 %v379
    %732 = vmatpush.msra.mxu0 %v375
    %733 = vmatpush.msra.mxu0 %v371
    %734 = vmatpush.msra.mxu0 %v367
    %735 = vmatpush.msra.mxu0 %v363
    %736 = vmatpush.msra.mxu0 %v359
    %737 = vmatpush.msra.mxu0 %v355
    %738 = vmatpush.msra.mxu0 %v351
    %739 = vmatpush.msra.mxu0 %v347
    %740 = vmatpush.msra.mxu0 %v343
    %741 = vmatpush.msra.mxu0 %v339
    %742 = vmatpush.msra.mxu0 %v335
    %743 = vmatpush.msra.mxu0 %v331
    %744 = vmatpush.msra.mxu0 %v327
    %745 = vmatpush.msra.mxu0 %v323
    %746 = vmatmul.f32.gmra.mxu0 %v708
    %v747 = vpop.f32.mrf.mxu0
    %v748 = vadd.f32 0.0, %v747
    %749 = vdwg.mxu0
    %750 = vmatpush.msra.mxu0 %v384
    %751 = vmatpush.msra.mxu0 %v380
    %752 = vmatpush.msra.mxu0 %v376
    %753 = vmatpush.msra.mxu0 %v372
    %754 = vmatpush.msra.mxu0 %v368
    %755 = vmatpush.msra.mxu0 %v364
    %756 = vmatpush.msra.mxu0 %v360
    %757 = vmatpush.msra.mxu0 %v356
    %758 = vmatpush.msra.mxu0 %v352
    %759 = vmatpush.msra.mxu0 %v348
    %760 = vmatpush.msra.mxu0 %v344
    %761 = vmatpush.msra.mxu0 %v340
    %762 = vmatpush.msra.mxu0 %v336
    %763 = vmatpush.msra.mxu0 %v332
    %764 = vmatpush.msra.mxu0 %v328
    %765 = vmatpush.msra.mxu0 %v324
    %766 = vmatmul.f32.gmra.mxu0 %v708
    %v767 = vpop.f32.mrf.mxu0
    %v768 = vadd.f32 0.0, %v767
    %769 = vdwg.mxu0
    %770 = vmatpush.msra.mxu0 %v385
    %771 = vmatpush.msra.mxu0 %v381
    %772 = vmatpush.msra.mxu0 %v377
    %773 = vmatpush.msra.mxu0 %v373
    %774 = vmatpush.msra.mxu0 %v369
    %775 = vmatpush.msra.mxu0 %v365
    %776 = vmatpush.msra.mxu0 %v361
    %777 = vmatpush.msra.mxu0 %v357
    %778 = vmatpush.msra.mxu0 %v353
    %779 = vmatpush.msra.mxu0 %v349
    %780 = vmatpush.msra.mxu0 %v345
    %781 = vmatpush.msra.mxu0 %v341
    %782 = vmatpush.msra.mxu0 %v337
    %783 = vmatpush.msra.mxu0 %v333
    %784 = vmatpush.msra.mxu0 %v329
    %785 = vmatpush.msra.mxu0 %v325
    %786 = vmatmul.f32.gmra.mxu0 %v708
    %v787 = vpop.f32.mrf.mxu0
    %v788 = vadd.f32 0.0, %v787
    %789 = vdwg.mxu0
    %v794 = vrot.slane %v728, 4
    %v795 = vrot.slane %v748, 4
    %v796 = vrot.slane %v768, 4
    %v797 = vrot.slane %v788, 4
    %v802 = vadd.f32 %v318, %v794
    %v803 = vadd.f32 %v319, %v795
    %v804 = vadd.f32 %v320, %v796
    %v805 = vadd.f32 %v321, %v797
    %v806 = vxor.u32 %v802, 2147483648
    %v807 = vmul.f32 %v806, 1.442695
    %v808 = vpow.pop %v807
    %v809 = vadd.f32 %v808, 1.0
    %v810 = vrcp.pop %v809
    %v811 = vmul.f32 %v809, %v810
    %v812 = vsub.f32 1.0, %v811
    %v813 = vmul.f32 %v810, %v812
    %v814 = vadd.f32 %v810, %v813
    %vm815 = vweird.f32 %v809
    %vm816 = vweird.f32 %v810
    %vm817 = vmor %vm815, %vm816
    %v818 = vsel %vm817, %v810, %v814
    %v819 = vand.u32 2147483647, %v809
    %vm820 = vcmp.eq.f32.partialorder %v819, 8.507059e+37
    %v821 = vand.u32 %v809, 2147483648
    %v822 = vor.u32 1.1754944e-38, %v821
    %v823 = vsel %vm820, %v822, %v818
    %v824 = vmul.f32 1.0, %v823
    %v825 = vxor.u32 %v803, 2147483648
    %v826 = vmul.f32 %v825, 1.442695
    %v827 = vpow.pop %v826
    %v828 = vadd.f32 %v827, 1.0
    %v829 = vrcp.pop %v828
    %v830 = vmul.f32 %v828, %v829
    %v831 = vsub.f32 1.0, %v830
    %v832 = vmul.f32 %v829, %v831
    %v833 = vadd.f32 %v829, %v832
    %vm834 = vweird.f32 %v828
    %vm835 = vweird.f32 %v829
    %vm836 = vmor %vm834, %vm835
    %v837 = vsel %vm836, %v829, %v833
    %v838 = vand.u32 2147483647, %v828
    %vm839 = vcmp.eq.f32.partialorder %v838, 8.507059e+37
    %v840 = vand.u32 %v828, 2147483648
    %v841 = vor.u32 1.1754944e-38, %v840
    %v842 = vsel %vm839, %v841, %v837
    %v843 = vmul.f32 1.0, %v842
    %v844 = vtanh.pop %v804
    %v845 = vxor.u32 %v805, 2147483648
    %v846 = vmul.f32 %v845, 1.442695
    %v847 = vpow.pop %v846
    %v848 = vadd.f32 %v847, 1.0
    %v849 = vrcp.pop %v848
    %v850 = vmul.f32 %v848, %v849
    %v851 = vsub.f32 1.0, %v850
    %v852 = vmul.f32 %v849, %v851
    %v853 = vadd.f32 %v849, %v852
    %vm854 = vweird.f32 %v848
    %vm855 = vweird.f32 %v849
    %vm856 = vmor %vm854, %vm855
    %v857 = vsel %vm856, %v849, %v853
    %v858 = vand.u32 2147483647, %v848
    %vm859 = vcmp.eq.f32.partialorder %v858, 8.507059e+37
    %v860 = vand.u32 %v848, 2147483648
    %v861 = vor.u32 1.1754944e-38, %v860
    %v862 = vsel %vm859, %v861, %v857
    %v863 = vmul.f32 1.0, %v862
    %v865 = vrot.slane %v704, 6
    %v867 = vmul.f32 %v843, %v865
    %v868 = vmul.f32 %v824, %v844
    %v869 = vadd.f32 %v867, %v868
    %v870 = vtanh.pop %v869
    %v871 = vmul.f32 %v863, %v870
    %v873 = vrot.slane %v871, 4
    %875 = vmatpush.msra.mxu0 %v382
    %876 = vmatpush.msra.mxu0 %v378
    %877 = vmatpush.msra.mxu0 %v374
    %878 = vmatpush.msra.mxu0 %v370
    %879 = vmatpush.msra.mxu0 %v366
    %880 = vmatpush.msra.mxu0 %v362
    %881 = vmatpush.msra.mxu0 %v358
    %882 = vmatpush.msra.mxu0 %v354
    %883 = vmatpush.msra.mxu0 %v350
    %884 = vmatpush.msra.mxu0 %v346
    %885 = vmatpush.msra.mxu0 %v342
    %886 = vmatpush.msra.mxu0 %v338
    %887 = vmatpush.msra.mxu0 %v334
    %888 = vmatpush.msra.mxu0 %v330
    %889 = vmatpush.msra.mxu0 %v326
    %890 = vmatpush.msra.mxu0 %v322
    %891 = vmatmul.f32.gmra.mxu0 %v873
    %v892 = vpop.f32.mrf.mxu0
    %v893 = vadd.f32 0.0, %v892
    %894 = vdwg.mxu0
    %895 = vmatpush.msra.mxu0 %v383
    %896 = vmatpush.msra.mxu0 %v379
    %897 = vmatpush.msra.mxu0 %v375
    %898 = vmatpush.msra.mxu0 %v371
    %899 = vmatpush.msra.mxu0 %v367
    %900 = vmatpush.msra.mxu0 %v363
    %901 = vmatpush.msra.mxu0 %v359
    %902 = vmatpush.msra.mxu0 %v355
    %903 = vmatpush.msra.mxu0 %v351
    %904 = vmatpush.msra.mxu0 %v347
    %905 = vmatpush.msra.mxu0 %v343
    %906 = vmatpush.msra.mxu0 %v339
    %907 = vmatpush.msra.mxu0 %v335
    %908 = vmatpush.msra.mxu0 %v331
    %909 = vmatpush.msra.mxu0 %v327
    %910 = vmatpush.msra.mxu0 %v323
    %911 = vmatmul.f32.gmra.mxu0 %v873
    %v912 = vpop.f32.mrf.mxu0
    %v913 = vadd.f32 0.0, %v912
    %914 = vdwg.mxu0
    %915 = vmatpush.msra.mxu0 %v384
    %916 = vmatpush.msra.mxu0 %v380
    %917 = vmatpush.msra.mxu0 %v376
    %918 = vmatpush.msra.mxu0 %v372
    %919 = vmatpush.msra.mxu0 %v368
    %920 = vmatpush.msra.mxu0 %v364
    %921 = vmatpush.msra.mxu0 %v360
    %922 = vmatpush.msra.mxu0 %v356
    %923 = vmatpush.msra.mxu0 %v352
    %924 = vmatpush.msra.mxu0 %v348
    %925 = vmatpush.msra.mxu0 %v344
    %926 = vmatpush.msra.mxu0 %v340
    %927 = vmatpush.msra.mxu0 %v336
    %928 = vmatpush.msra.mxu0 %v332
    %929 = vmatpush.msra.mxu0 %v328
    %930 = vmatpush.msra.mxu0 %v324
    %931 = vmatmul.f32.gmra.mxu0 %v873
    %v932 = vpop.f32.mrf.mxu0
    %v933 = vadd.f32 0.0, %v932
    %934 = vdwg.mxu0
    %935 = vmatpush.msra.mxu0 %v385
    %936 = vmatpush.msra.mxu0 %v381
    %937 = vmatpush.msra.mxu0 %v377
    %938 = vmatpush.msra.mxu0 %v373
    %939 = vmatpush.msra.mxu0 %v369
    %940 = vmatpush.msra.mxu0 %v365
    %941 = vmatpush.msra.mxu0 %v361
    %942 = vmatpush.msra.mxu0 %v357
    %943 = vmatpush.msra.mxu0 %v353
    %944 = vmatpush.msra.mxu0 %v349
    %945 = vmatpush.msra.mxu0 %v345
    %946 = vmatpush.msra.mxu0 %v341
    %947 = vmatpush.msra.mxu0 %v337
    %948 = vmatpush.msra.mxu0 %v333
    %949 = vmatpush.msra.mxu0 %v329
    %950 = vmatpush.msra.mxu0 %v325
    %951 = vmatmul.f32.gmra.mxu0 %v873
    %v952 = vpop.f32.mrf.mxu0
    %v953 = vadd.f32 0.0, %v952
    %954 = vdwg.mxu0
    %v959 = vrot.slane %v893, 2
    %v960 = vrot.slane %v913, 2
    %v961 = vrot.slane %v933, 2
    %v962 = vrot.slane %v953, 2
    %v967 = vadd.f32 %v541, %v959
    %v968 = vadd.f32 %v542, %v960
    %v969 = vadd.f32 %v543, %v961
    %v970 = vadd.f32 %v544, %v962
    %v971 = vxor.u32 %v967, 2147483648
    %v972 = vmul.f32 %v971, 1.442695
    %v973 = vpow.pop %v972
    %v974 = vadd.f32 %v973, 1.0
    %v975 = vrcp.pop %v974
    %v976 = vmul.f32 %v974, %v975
    %v977 = vsub.f32 1.0, %v976
    %v978 = vmul.f32 %v975, %v977
    %v979 = vadd.f32 %v975, %v978
    %vm980 = vweird.f32 %v974
    %vm981 = vweird.f32 %v975
    %vm982 = vmor %vm980, %vm981
    %v983 = vsel %vm982, %v975, %v979
    %v984 = vand.u32 2147483647, %v974
    %vm985 = vcmp.eq.f32.partialorder %v984, 8.507059e+37
    %v986 = vand.u32 %v974, 2147483648
    %v987 = vor.u32 1.1754944e-38, %v986
    %v988 = vsel %vm985, %v987, %v983
    %v989 = vmul.f32 1.0, %v988
    %v990 = vxor.u32 %v968, 2147483648
    %v991 = vmul.f32 %v990, 1.442695
    %v992 = vpow.pop %v991
    %v993 = vadd.f32 %v992, 1.0
    %v994 = vrcp.pop %v993
    %v995 = vmul.f32 %v993, %v994
    %v996 = vsub.f32 1.0, %v995
    %v997 = vmul.f32 %v994, %v996
    %v998 = vadd.f32 %v994, %v997
    %vm999 = vweird.f32 %v993
    %vm1000 = vweird.f32 %v994
    %vm1001 = vmor %vm999, %vm1000
    %v1002 = vsel %vm1001, %v994, %v998
    %v1003 = vand.u32 2147483647, %v993
    %vm1004 = vcmp.eq.f32.partialorder %v1003, 8.507059e+37
    %v1005 = vand.u32 %v993, 2147483648
    %v1006 = vor.u32 1.1754944e-38, %v1005
    %v1007 = vsel %vm1004, %v1006, %v1002
    %v1008 = vmul.f32 1.0, %v1007
    %v1009 = vtanh.pop %v969
    %v1010 = vxor.u32 %v970, 2147483648
    %v1011 = vmul.f32 %v1010, 1.442695
    %v1012 = vpow.pop %v1011
    %v1013 = vadd.f32 %v1012, 1.0
    %v1014 = vrcp.pop %v1013
    %v1015 = vmul.f32 %v1013, %v1014
    %v1016 = vsub.f32 1.0, %v1015
    %v1017 = vmul.f32 %v1014, %v1016
    %v1018 = vadd.f32 %v1014, %v1017
    %vm1019 = vweird.f32 %v1013
    %vm1020 = vweird.f32 %v1014
    %vm1021 = vmor %vm1019, %vm1020
    %v1022 = vsel %vm1021, %v1014, %v1018
    %v1023 = vand.u32 2147483647, %v1013
    %vm1024 = vcmp.eq.f32.partialorder %v1023, 8.507059e+37
    %v1025 = vand.u32 %v1013, 2147483648
    %v1026 = vor.u32 1.1754944e-38, %v1025
    %v1027 = vsel %vm1024, %v1026, %v1022
    %v1028 = vmul.f32 1.0, %v1027
    %v1030 = vrot.slane %v869, 6
    %v1032 = vmul.f32 %v1008, %v1030
    %v1033 = vmul.f32 %v989, %v1009
    %v1034 = vadd.f32 %v1032, %v1033
    %v1035 = vtanh.pop %v1034
    %v1036 = vmul.f32 %v1028, %v1035
    %v1041 = vrot.slane %v232, 6
    %v1042 = vrot.slane %v255, 6
    %v1043 = vrot.slane %v278, 6
    %v1044 = vrot.slane %v301, 6
    %v1049 = vadd.f32 %v143, %v1041
    %v1050 = vadd.f32 %v166, %v1042
    %v1051 = vadd.f32 %v189, %v1043
    %v1052 = vadd.f32 %v212, %v1044
    %v1054 = vrot.slane %v1036, 6
    %1056 = vmatpush.msra.mxu0 %v382
    %1057 = vmatpush.msra.mxu0 %v378
    %1058 = vmatpush.msra.mxu0 %v374
    %1059 = vmatpush.msra.mxu0 %v370
    %1060 = vmatpush.msra.mxu0 %v366
    %1061 = vmatpush.msra.mxu0 %v362
    %1062 = vmatpush.msra.mxu0 %v358
    %1063 = vmatpush.msra.mxu0 %v354
    %1064 = vmatpush.msra.mxu0 %v350
    %1065 = vmatpush.msra.mxu0 %v346
    %1066 = vmatpush.msra.mxu0 %v342
    %1067 = vmatpush.msra.mxu0 %v338
    %1068 = vmatpush.msra.mxu0 %v334
    %1069 = vmatpush.msra.mxu0 %v330
    %1070 = vmatpush.msra.mxu0 %v326
    %1071 = vmatpush.msra.mxu0 %v322
    %1072 = vmatmul.f32.gmra.mxu0 %v1054
    %v1073 = vpop.f32.mrf.mxu0
    %v1074 = vadd.f32 0.0, %v1073
    %1075 = vdwg.mxu0
    %1076 = vmatpush.msra.mxu0 %v383
    %1077 = vmatpush.msra.mxu0 %v379
    %1078 = vmatpush.msra.mxu0 %v375
    %1079 = vmatpush.msra.mxu0 %v371
    %1080 = vmatpush.msra.mxu0 %v367
    %1081 = vmatpush.msra.mxu0 %v363
    %1082 = vmatpush.msra.mxu0 %v359
    %1083 = vmatpush.msra.mxu0 %v355
    %1084 = vmatpush.msra.mxu0 %v351
    %1085 = vmatpush.msra.mxu0 %v347
    %1086 = vmatpush.msra.mxu0 %v343
    %1087 = vmatpush.msra.mxu0 %v339
    %1088 = vmatpush.msra.mxu0 %v335
    %1089 = vmatpush.msra.mxu0 %v331
    %1090 = vmatpush.msra.mxu0 %v327
    %1091 = vmatpush.msra.mxu0 %v323
    %1092 = vmatmul.f32.gmra.mxu0 %v1054
    %v1093 = vpop.f32.mrf.mxu0
    %v1094 = vadd.f32 0.0, %v1093
    %1095 = vdwg.mxu0
    %1096 = vmatpush.msra.mxu0 %v384
    %1097 = vmatpush.msra.mxu0 %v380
    %1098 = vmatpush.msra.mxu0 %v376
    %1099 = vmatpush.msra.mxu0 %v372
    %1100 = vmatpush.msra.mxu0 %v368
    %1101 = vmatpush.msra.mxu0 %v364
    %1102 = vmatpush.msra.mxu0 %v360
    %1103 = vmatpush.msra.mxu0 %v356
    %1104 = vmatpush.msra.mxu0 %v352
    %1105 = vmatpush.msra.mxu0 %v348
    %1106 = vmatpush.msra.mxu0 %v344
    %1107 = vmatpush.msra.mxu0 %v340
    %1108 = vmatpush.msra.mxu0 %v336
    %1109 = vmatpush.msra.mxu0 %v332
    %1110 = vmatpush.msra.mxu0 %v328
    %1111 = vmatpush.msra.mxu0 %v324
    %1112 = vmatmul.f32.gmra.mxu0 %v1054
    %v1113 = vpop.f32.mrf.mxu0
    %v1114 = vadd.f32 0.0, %v1113
    %1115 = vdwg.mxu0
    %1116 = vmatpush.msra.mxu0 %v385
    %1117 = vmatpush.msra.mxu0 %v381
    %1118 = vmatpush.msra.mxu0 %v377
    %1119 = vmatpush.msra.mxu0 %v373
    %1120 = vmatpush.msra.mxu0 %v369
    %1121 = vmatpush.msra.mxu0 %v365
    %1122 = vmatpush.msra.mxu0 %v361
    %1123 = vmatpush.msra.mxu0 %v357
    %1124 = vmatpush.msra.mxu0 %v353
    %1125 = vmatpush.msra.mxu0 %v349
    %1126 = vmatpush.msra.mxu0 %v345
    %1127 = vmatpush.msra.mxu0 %v341
    %1128 = vmatpush.msra.mxu0 %v337
    %1129 = vmatpush.msra.mxu0 %v333
    %1130 = vmatpush.msra.mxu0 %v329
    %1131 = vmatpush.msra.mxu0 %v325
    %1132 = vmatmul.f32.gmra.mxu0 %v1054
    %v1133 = vpop.f32.mrf.mxu0
    %v1134 = vadd.f32 0.0, %v1133
    %1135 = vdwg.mxu0
    %v1136 = vadd.f32 %v1049, %v1074
    %v1137 = vadd.f32 %v1050, %v1094
    %v1138 = vadd.f32 %v1051, %v1114
    %v1139 = vadd.f32 %v1052, %v1134
    %v1140 = vxor.u32 %v1136, 2147483648
    %v1141 = vmul.f32 %v1140, 1.442695
    %v1142 = vpow.pop %v1141
    %v1143 = vadd.f32 %v1142, 1.0
    %v1144 = vrcp.pop %v1143
    %v1145 = vmul.f32 %v1143, %v1144
    %v1146 = vsub.f32 1.0, %v1145
    %v1147 = vmul.f32 %v1144, %v1146
    %v1148 = vadd.f32 %v1144, %v1147
    %vm1149 = vweird.f32 %v1143
    %vm1150 = vweird.f32 %v1144
    %vm1151 = vmor %vm1149, %vm1150
    %v1152 = vsel %vm1151, %v1144, %v1148
    %v1153 = vand.u32 2147483647, %v1143
    %vm1154 = vcmp.eq.f32.partialorder %v1153, 8.507059e+37
    %v1155 = vand.u32 %v1143, 2147483648
    %v1156 = vor.u32 1.1754944e-38, %v1155
    %v1157 = vsel %vm1154, %v1156, %v1152
    %v1158 = vmul.f32 1.0, %v1157
    %v1159 = vxor.u32 %v1137, 2147483648
    %v1160 = vmul.f32 %v1159, 1.442695
    %v1161 = vpow.pop %v1160
    %v1162 = vadd.f32 %v1161, 1.0
    %v1163 = vrcp.pop %v1162
    %v1164 = vmul.f32 %v1162, %v1163
    %v1165 = vsub.f32 1.0, %v1164
    %v1166 = vmul.f32 %v1163, %v1165
    %v1167 = vadd.f32 %v1163, %v1166
    %vm1168 = vweird.f32 %v1162
    %vm1169 = vweird.f32 %v1163
    %vm1170 = vmor %vm1168, %vm1169
    %v1171 = vsel %vm1170, %v1163, %v1167
    %v1172 = vand.u32 2147483647, %v1162
    %vm1173 = vcmp.eq.f32.partialorder %v1172, 8.507059e+37
    %v1174 = vand.u32 %v1162, 2147483648
    %v1175 = vor.u32 1.1754944e-38, %v1174
    %v1176 = vsel %vm1173, %v1175, %v1171
    %v1177 = vmul.f32 1.0, %v1176
    %v1178 = vtanh.pop %v1138
    %v1179 = vxor.u32 %v1139, 2147483648
    %v1180 = vmul.f32 %v1179, 1.442695
    %v1181 = vpow.pop %v1180
    %v1182 = vadd.f32 %v1181, 1.0
    %v1183 = vrcp.pop %v1182
    %v1184 = vmul.f32 %v1182, %v1183
    %v1185 = vsub.f32 1.0, %v1184
    %v1186 = vmul.f32 %v1183, %v1185
    %v1187 = vadd.f32 %v1183, %v1186
    %vm1188 = vweird.f32 %v1182
    %vm1189 = vweird.f32 %v1183
    %vm1190 = vmor %vm1188, %vm1189
    %v1191 = vsel %vm1190, %v1183, %v1187
    %v1192 = vand.u32 2147483647, %v1182
    %vm1193 = vcmp.eq.f32.partialorder %v1192, 8.507059e+37
    %v1194 = vand.u32 %v1182, 2147483648
    %v1195 = vor.u32 1.1754944e-38, %v1194
    %v1196 = vsel %vm1193, %v1195, %v1191
    %v1197 = vmul.f32 1.0, %v1196
    %v1199 = vrot.slane %v1034, 6
    %v1201 = vmul.f32 %v1177, %v1199
    %v1202 = vmul.f32 %v1158, %v1178
    %v1203 = vadd.f32 %v1201, %v1202
    %v1204 = vtanh.pop %v1203
    %v1205 = vmul.f32 %v1197, %v1204
    %v1206 = vrot.slane %v232, 2
    %v1207 = vrot.slane %v255, 2
    %v1208 = vrot.slane %v278, 2
    %v1209 = vrot.slane %v301, 2
    %v1214 = vadd.f32 %v143, %v1206
    %v1215 = vadd.f32 %v166, %v1207
    %v1216 = vadd.f32 %v189, %v1208
    %v1217 = vadd.f32 %v212, %v1209
    %1218 = vmatpush.msra.mxu0 %v382
    %1219 = vmatpush.msra.mxu0 %v378
    %1220 = vmatpush.msra.mxu0 %v374
    %1221 = vmatpush.msra.mxu0 %v370
    %1222 = vmatpush.msra.mxu0 %v366
    %1223 = vmatpush.msra.mxu0 %v362
    %1224 = vmatpush.msra.mxu0 %v358
    %1225 = vmatpush.msra.mxu0 %v354
    %1226 = vmatpush.msra.mxu0 %v350
    %1227 = vmatpush.msra.mxu0 %v346
    %1228 = vmatpush.msra.mxu0 %v342
    %1229 = vmatpush.msra.mxu0 %v338
    %1230 = vmatpush.msra.mxu0 %v334
    %1231 = vmatpush.msra.mxu0 %v330
    %1232 = vmatpush.msra.mxu0 %v326
    %1233 = vmatpush.msra.mxu0 %v322
    %1234 = vmatmul.f32.gmra.mxu0 %v1205
    %v1235 = vpop.f32.mrf.mxu0
    %v1236 = vadd.f32 0.0, %v1235
    %1237 = vdwg.mxu0
    %1238 = vmatpush.msra.mxu0 %v383
    %1239 = vmatpush.msra.mxu0 %v379
    %1240 = vmatpush.msra.mxu0 %v375
    %1241 = vmatpush.msra.mxu0 %v371
    %1242 = vmatpush.msra.mxu0 %v367
    %1243 = vmatpush.msra.mxu0 %v363
    %1244 = vmatpush.msra.mxu0 %v359
    %1245 = vmatpush.msra.mxu0 %v355
    %1246 = vmatpush.msra.mxu0 %v351
    %1247 = vmatpush.msra.mxu0 %v347
    %1248 = vmatpush.msra.mxu0 %v343
    %1249 = vmatpush.msra.mxu0 %v339
    %1250 = vmatpush.msra.mxu0 %v335
    %1251 = vmatpush.msra.mxu0 %v331
    %1252 = vmatpush.msra.mxu0 %v327
    %1253 = vmatpush.msra.mxu0 %v323
    %1254 = vmatmul.f32.gmra.mxu0 %v1205
    %v1255 = vpop.f32.mrf.mxu0
    %v1256 = vadd.f32 0.0, %v1255
    %1257 = vdwg.mxu0
    %1258 = vmatpush.msra.mxu0 %v384
    %1259 = vmatpush.msra.mxu0 %v380
    %1260 = vmatpush.msra.mxu0 %v376
    %1261 = vmatpush.msra.mxu0 %v372
    %1262 = vmatpush.msra.mxu0 %v368
    %1263 = vmatpush.msra.mxu0 %v364
    %1264 = vmatpush.msra.mxu0 %v360
    %1265 = vmatpush.msra.mxu0 %v356
    %1266 = vmatpush.msra.mxu0 %v352
    %1267 = vmatpush.msra.mxu0 %v348
    %1268 = vmatpush.msra.mxu0 %v344
    %1269 = vmatpush.msra.mxu0 %v340
    %1270 = vmatpush.msra.mxu0 %v336
    %1271 = vmatpush.msra.mxu0 %v332
    %1272 = vmatpush.msra.mxu0 %v328
    %1273 = vmatpush.msra.mxu0 %v324
    %1274 = vmatmul.f32.gmra.mxu0 %v1205
    %v1275 = vpop.f32.mrf.mxu0
    %v1276 = vadd.f32 0.0, %v1275
    %1277 = vdwg.mxu0
    %1278 = vmatpush.msra.mxu0 %v385
    %1279 = vmatpush.msra.mxu0 %v381
    %1280 = vmatpush.msra.mxu0 %v377
    %1281 = vmatpush.msra.mxu0 %v373
    %1282 = vmatpush.msra.mxu0 %v369
    %1283 = vmatpush.msra.mxu0 %v365
    %1284 = vmatpush.msra.mxu0 %v361
    %1285 = vmatpush.msra.mxu0 %v357
    %1286 = vmatpush.msra.mxu0 %v353
    %1287 = vmatpush.msra.mxu0 %v349
    %1288 = vmatpush.msra.mxu0 %v345
    %1289 = vmatpush.msra.mxu0 %v341
    %1290 = vmatpush.msra.mxu0 %v337
    %1291 = vmatpush.msra.mxu0 %v333
    %1292 = vmatpush.msra.mxu0 %v329
    %1293 = vmatpush.msra.mxu0 %v325
    %1294 = vmatmul.f32.gmra.mxu0 %v1205
    %v1295 = vpop.f32.mrf.mxu0
    %v1296 = vadd.f32 0.0, %v1295
    %1297 = vdwg.mxu0
    %v1302 = vrot.slane %v1236, 6
    %v1303 = vrot.slane %v1256, 6
    %v1304 = vrot.slane %v1276, 6
    %v1305 = vrot.slane %v1296, 6
    %v1310 = vadd.f32 %v1214, %v1302
    %v1311 = vadd.f32 %v1215, %v1303
    %v1312 = vadd.f32 %v1216, %v1304
    %v1313 = vadd.f32 %v1217, %v1305
    %v1314 = vxor.u32 %v1310, 2147483648
    %v1315 = vmul.f32 %v1314, 1.442695
    %v1316 = vpow.pop %v1315
    %v1317 = vadd.f32 %v1316, 1.0
    %v1318 = vrcp.pop %v1317
    %v1319 = vmul.f32 %v1317, %v1318
    %v1320 = vsub.f32 1.0, %v1319
    %v1321 = vmul.f32 %v1318, %v1320
    %v1322 = vadd.f32 %v1318, %v1321
    %vm1323 = vweird.f32 %v1317
    %vm1324 = vweird.f32 %v1318
    %vm1325 = vmor %vm1323, %vm1324
    %v1326 = vsel %vm1325, %v1318, %v1322
    %v1327 = vand.u32 2147483647, %v1317
    %vm1328 = vcmp.eq.f32.partialorder %v1327, 8.507059e+37
    %v1329 = vand.u32 %v1317, 2147483648
    %v1330 = vor.u32 1.1754944e-38, %v1329
    %v1331 = vsel %vm1328, %v1330, %v1326
    %v1332 = vmul.f32 1.0, %v1331
    %v1333 = vxor.u32 %v1311, 2147483648
    %v1334 = vmul.f32 %v1333, 1.442695
    %v1335 = vpow.pop %v1334
    %v1336 = vadd.f32 %v1335, 1.0
    %v1337 = vrcp.pop %v1336
    %v1338 = vmul.f32 %v1336, %v1337
    %v1339 = vsub.f32 1.0, %v1338
    %v1340 = vmul.f32 %v1337, %v1339
    %v1341 = vadd.f32 %v1337, %v1340
    %vm1342 = vweird.f32 %v1336
    %vm1343 = vweird.f32 %v1337
    %vm1344 = vmor %vm1342, %vm1343
    %v1345 = vsel %vm1344, %v1337, %v1341
    %v1346 = vand.u32 2147483647, %v1336
    %vm1347 = vcmp.eq.f32.partialorder %v1346, 8.507059e+37
    %v1348 = vand.u32 %v1336, 2147483648
    %v1349 = vor.u32 1.1754944e-38, %v1348
    %v1350 = vsel %vm1347, %v1349, %v1345
    %v1351 = vmul.f32 1.0, %v1350
    %v1352 = vtanh.pop %v1312
    %v1353 = vxor.u32 %v1313, 2147483648
    %v1354 = vmul.f32 %v1353, 1.442695
    %v1355 = vpow.pop %v1354
    %v1356 = vadd.f32 %v1355, 1.0
    %v1357 = vrcp.pop %v1356
    %v1358 = vmul.f32 %v1356, %v1357
    %v1359 = vsub.f32 1.0, %v1358
    %v1360 = vmul.f32 %v1357, %v1359
    %v1361 = vadd.f32 %v1357, %v1360
    %vm1362 = vweird.f32 %v1356
    %vm1363 = vweird.f32 %v1357
    %vm1364 = vmor %vm1362, %vm1363
    %v1365 = vsel %vm1364, %v1357, %v1361
    %v1366 = vand.u32 2147483647, %v1356
    %vm1367 = vcmp.eq.f32.partialorder %v1366, 8.507059e+37
    %v1368 = vand.u32 %v1356, 2147483648
    %v1369 = vor.u32 1.1754944e-38, %v1368
    %v1370 = vsel %vm1367, %v1369, %v1365
    %v1371 = vmul.f32 1.0, %v1370
    %v1373 = vrot.slane %v1203, 6
    %v1375 = vmul.f32 %v1351, %v1373
    %v1376 = vmul.f32 %v1332, %v1352
    %v1377 = vadd.f32 %v1375, %v1376
    %v1378 = vtanh.pop %v1377
    %v1379 = vmul.f32 %v1371, %v1378
    %v1381 = vrot.slane %v1379, 2
    %1383 = vmatpush.msra.mxu0 %v382
    %1384 = vmatpush.msra.mxu0 %v378
    %1385 = vmatpush.msra.mxu0 %v374
    %1386 = vmatpush.msra.mxu0 %v370
    %1387 = vmatpush.msra.mxu0 %v366
    %1388 = vmatpush.msra.mxu0 %v362
    %1389 = vmatpush.msra.mxu0 %v358
    %1390 = vmatpush.msra.mxu0 %v354
    %1391 = vmatpush.msra.mxu0 %v350
    %1392 = vmatpush.msra.mxu0 %v346
    %1393 = vmatpush.msra.mxu0 %v342
    %1394 = vmatpush.msra.mxu0 %v338
    %1395 = vmatpush.msra.mxu0 %v334
    %1396 = vmatpush.msra.mxu0 %v330
    %1397 = vmatpush.msra.mxu0 %v326
    %1398 = vmatpush.msra.mxu0 %v322
    %1399 = vmatmul.f32.gmra.mxu0 %v1381
    %v1400 = vpop.f32.mrf.mxu0
    %v1401 = vadd.f32 0.0, %v1400
    %1402 = vdwg.mxu0
    %1403 = vmatpush.msra.mxu0 %v383
    %1404 = vmatpush.msra.mxu0 %v379
    %1405 = vmatpush.msra.mxu0 %v375
    %1406 = vmatpush.msra.mxu0 %v371
    %1407 = vmatpush.msra.mxu0 %v367
    %1408 = vmatpush.msra.mxu0 %v363
    %1409 = vmatpush.msra.mxu0 %v359
    %1410 = vmatpush.msra.mxu0 %v355
    %1411 = vmatpush.msra.mxu0 %v351
    %1412 = vmatpush.msra.mxu0 %v347
    %1413 = vmatpush.msra.mxu0 %v343
    %1414 = vmatpush.msra.mxu0 %v339
    %1415 = vmatpush.msra.mxu0 %v335
    %1416 = vmatpush.msra.mxu0 %v331
    %1417 = vmatpush.msra.mxu0 %v327
    %1418 = vmatpush.msra.mxu0 %v323
    %1419 = vmatmul.f32.gmra.mxu0 %v1381
    %v1420 = vpop.f32.mrf.mxu0
    %v1421 = vadd.f32 0.0, %v1420
    %1422 = vdwg.mxu0
    %1423 = vmatpush.msra.mxu0 %v384
    %1424 = vmatpush.msra.mxu0 %v380
    %1425 = vmatpush.msra.mxu0 %v376
    %1426 = vmatpush.msra.mxu0 %v372
    %1427 = vmatpush.msra.mxu0 %v368
    %1428 = vmatpush.msra.mxu0 %v364
    %1429 = vmatpush.msra.mxu0 %v360
    %1430 = vmatpush.msra.mxu0 %v356
    %1431 = vmatpush.msra.mxu0 %v352
    %1432 = vmatpush.msra.mxu0 %v348
    %1433 = vmatpush.msra.mxu0 %v344
    %1434 = vmatpush.msra.mxu0 %v340
    %1435 = vmatpush.msra.mxu0 %v336
    %1436 = vmatpush.msra.mxu0 %v332
    %1437 = vmatpush.msra.mxu0 %v328
    %1438 = vmatpush.msra.mxu0 %v324
    %1439 = vmatmul.f32.gmra.mxu0 %v1381
    %v1440 = vpop.f32.mrf.mxu0
    %v1441 = vadd.f32 0.0, %v1440
    %1442 = vdwg.mxu0
    %1443 = vmatpush.msra.mxu0 %v385
    %1444 = vmatpush.msra.mxu0 %v381
    %1445 = vmatpush.msra.mxu0 %v377
    %1446 = vmatpush.msra.mxu0 %v373
    %1447 = vmatpush.msra.mxu0 %v369
    %1448 = vmatpush.msra.mxu0 %v365
    %1449 = vmatpush.msra.mxu0 %v361
    %1450 = vmatpush.msra.mxu0 %v357
    %1451 = vmatpush.msra.mxu0 %v353
    %1452 = vmatpush.msra.mxu0 %v349
    %1453 = vmatpush.msra.mxu0 %v345
    %1454 = vmatpush.msra.mxu0 %v341
    %1455 = vmatpush.msra.mxu0 %v337
    %1456 = vmatpush.msra.mxu0 %v333
    %1457 = vmatpush.msra.mxu0 %v329
    %1458 = vmatpush.msra.mxu0 %v325
    %1459 = vmatmul.f32.gmra.mxu0 %v1381
    %v1460 = vpop.f32.mrf.mxu0
    %v1461 = vadd.f32 0.0, %v1460
    %1462 = vdwg.mxu0
    %v1467 = vrot.slane %v1401, 4
    %v1468 = vrot.slane %v1421, 4
    %v1469 = vrot.slane %v1441, 4
    %v1470 = vrot.slane %v1461, 4
    %v1475 = vadd.f32 %v1049, %v1467
    %v1476 = vadd.f32 %v1050, %v1468
    %v1477 = vadd.f32 %v1051, %v1469
    %v1478 = vadd.f32 %v1052, %v1470
    %v1479 = vxor.u32 %v1475, 2147483648
    %v1480 = vmul.f32 %v1479, 1.442695
    %v1481 = vpow.pop %v1480
    %v1482 = vadd.f32 %v1481, 1.0
    %v1483 = vrcp.pop %v1482
    %v1484 = vmul.f32 %v1482, %v1483
    %v1485 = vsub.f32 1.0, %v1484
    %v1486 = vmul.f32 %v1483, %v1485
    %v1487 = vadd.f32 %v1483, %v1486
    %vm1488 = vweird.f32 %v1482
    %vm1489 = vweird.f32 %v1483
    %vm1490 = vmor %vm1488, %vm1489
    %v1491 = vsel %vm1490, %v1483, %v1487
    %v1492 = vand.u32 2147483647, %v1482
    %vm1493 = vcmp.eq.f32.partialorder %v1492, 8.507059e+37
    %v1494 = vand.u32 %v1482, 2147483648
    %v1495 = vor.u32 1.1754944e-38, %v1494
    %v1496 = vsel %vm1493, %v1495, %v1491
    %v1497 = vmul.f32 1.0, %v1496
    %v1498 = vxor.u32 %v1476, 2147483648
    %v1499 = vmul.f32 %v1498, 1.442695
    %v1500 = vpow.pop %v1499
    %v1501 = vadd.f32 %v1500, 1.0
    %v1502 = vrcp.pop %v1501
    %v1503 = vmul.f32 %v1501, %v1502
    %v1504 = vsub.f32 1.0, %v1503
    %v1505 = vmul.f32 %v1502, %v1504
    %v1506 = vadd.f32 %v1502, %v1505
    %vm1507 = vweird.f32 %v1501
    %vm1508 = vweird.f32 %v1502
    %vm1509 = vmor %vm1507, %vm1508
    %v1510 = vsel %vm1509, %v1502, %v1506
    %v1511 = vand.u32 2147483647, %v1501
    %vm1512 = vcmp.eq.f32.partialorder %v1511, 8.507059e+37
    %v1513 = vand.u32 %v1501, 2147483648
    %v1514 = vor.u32 1.1754944e-38, %v1513
    %v1515 = vsel %vm1512, %v1514, %v1510
    %v1516 = vmul.f32 1.0, %v1515
    %v1517 = vtanh.pop %v1477
    %v1518 = vxor.u32 %v1478, 2147483648
    %v1519 = vmul.f32 %v1518, 1.442695
    %v1520 = vpow.pop %v1519
    %v1521 = vadd.f32 %v1520, 1.0
    %v1522 = vrcp.pop %v1521
    %v1523 = vmul.f32 %v1521, %v1522
    %v1524 = vsub.f32 1.0, %v1523
    %v1525 = vmul.f32 %v1522, %v1524
    %v1526 = vadd.f32 %v1522, %v1525
    %vm1527 = vweird.f32 %v1521
    %vm1528 = vweird.f32 %v1522
    %vm1529 = vmor %vm1527, %vm1528
    %v1530 = vsel %vm1529, %v1522, %v1526
    %v1531 = vand.u32 2147483647, %v1521
    %vm1532 = vcmp.eq.f32.partialorder %v1531, 8.507059e+37
    %v1533 = vand.u32 %v1521, 2147483648
    %v1534 = vor.u32 1.1754944e-38, %v1533
    %v1535 = vsel %vm1532, %v1534, %v1530
    %v1536 = vmul.f32 1.0, %v1535
    %v1538 = vrot.slane %v1377, 6
    %v1540 = vmul.f32 %v1516, %v1538
    %v1541 = vmul.f32 %v1497, %v1517
    %v1542 = vadd.f32 %v1540, %v1541
    %v1543 = vtanh.pop %v1542
    %v1544 = vmul.f32 %v1536, %v1543
    %v1546 = vrot.slane %v1544, 4
    %1548 = vmatpush.msra.mxu0 %v382
    %1549 = vmatpush.msra.mxu0 %v378
    %1550 = vmatpush.msra.mxu0 %v374
    %1551 = vmatpush.msra.mxu0 %v370
    %1552 = vmatpush.msra.mxu0 %v366
    %1553 = vmatpush.msra.mxu0 %v362
    %1554 = vmatpush.msra.mxu0 %v358
    %1555 = vmatpush.msra.mxu0 %v354
    %1556 = vmatpush.msra.mxu0 %v350
    %1557 = vmatpush.msra.mxu0 %v346
    %1558 = vmatpush.msra.mxu0 %v342
    %1559 = vmatpush.msra.mxu0 %v338
    %1560 = vmatpush.msra.mxu0 %v334
    %1561 = vmatpush.msra.mxu0 %v330
    %1562 = vmatpush.msra.mxu0 %v326
    %1563 = vmatpush.msra.mxu0 %v322
    %1564 = vmatmul.f32.gmra.mxu0 %v1546
    %v1565 = vpop.f32.mrf.mxu0
    %v1566 = vadd.f32 0.0, %v1565
    %1567 = vdwg.mxu0
    %1568 = vmatpush.msra.mxu0 %v383
    %1569 = vmatpush.msra.mxu0 %v379
    %1570 = vmatpush.msra.mxu0 %v375
    %1571 = vmatpush.msra.mxu0 %v371
    %1572 = vmatpush.msra.mxu0 %v367
    %1573 = vmatpush.msra.mxu0 %v363
    %1574 = vmatpush.msra.mxu0 %v359
    %1575 = vmatpush.msra.mxu0 %v355
    %1576 = vmatpush.msra.mxu0 %v351
    %1577 = vmatpush.msra.mxu0 %v347
    %1578 = vmatpush.msra.mxu0 %v343
    %1579 = vmatpush.msra.mxu0 %v339
    %1580 = vmatpush.msra.mxu0 %v335
    %1581 = vmatpush.msra.mxu0 %v331
    %1582 = vmatpush.msra.mxu0 %v327
    %1583 = vmatpush.msra.mxu0 %v323
    %1584 = vmatmul.f32.gmra.mxu0 %v1546
    %v1585 = vpop.f32.mrf.mxu0
    %v1586 = vadd.f32 0.0, %v1585
    %1587 = vdwg.mxu0
    %1588 = vmatpush.msra.mxu0 %v384
    %1589 = vmatpush.msra.mxu0 %v380
    %1590 = vmatpush.msra.mxu0 %v376
    %1591 = vmatpush.msra.mxu0 %v372
    %1592 = vmatpush.msra.mxu0 %v368
    %1593 = vmatpush.msra.mxu0 %v364
    %1594 = vmatpush.msra.mxu0 %v360
    %1595 = vmatpush.msra.mxu0 %v356
    %1596 = vmatpush.msra.mxu0 %v352
    %1597 = vmatpush.msra.mxu0 %v348
    %1598 = vmatpush.msra.mxu0 %v344
    %1599 = vmatpush.msra.mxu0 %v340
    %1600 = vmatpush.msra.mxu0 %v336
    %1601 = vmatpush.msra.mxu0 %v332
    %1602 = vmatpush.msra.mxu0 %v328
    %1603 = vmatpush.msra.mxu0 %v324
    %1604 = vmatmul.f32.gmra.mxu0 %v1546
    %v1605 = vpop.f32.mrf.mxu0
    %v1606 = vadd.f32 0.0, %v1605
    %1607 = vdwg.mxu0
    %1608 = vmatpush.msra.mxu0 %v385
    %1609 = vmatpush.msra.mxu0 %v381
    %1610 = vmatpush.msra.mxu0 %v377
    %1611 = vmatpush.msra.mxu0 %v373
    %1612 = vmatpush.msra.mxu0 %v369
    %1613 = vmatpush.msra.mxu0 %v365
    %1614 = vmatpush.msra.mxu0 %v361
    %1615 = vmatpush.msra.mxu0 %v357
    %1616 = vmatpush.msra.mxu0 %v353
    %1617 = vmatpush.msra.mxu0 %v349
    %1618 = vmatpush.msra.mxu0 %v345
    %1619 = vmatpush.msra.mxu0 %v341
    %1620 = vmatpush.msra.mxu0 %v337
    %1621 = vmatpush.msra.mxu0 %v333
    %1622 = vmatpush.msra.mxu0 %v329
    %1623 = vmatpush.msra.mxu0 %v325
    %1624 = vmatmul.f32.gmra.mxu0 %v1546
    %v1625 = vpop.f32.mrf.mxu0
    %v1626 = vadd.f32 0.0, %v1625
    %1627 = vdwg.mxu0
    %v1632 = vrot.slane %v1566, 2
    %v1633 = vrot.slane %v1586, 2
    %v1634 = vrot.slane %v1606, 2
    %v1635 = vrot.slane %v1626, 2
    %v1640 = vadd.f32 %v1214, %v1632
    %v1641 = vadd.f32 %v1215, %v1633
    %v1642 = vadd.f32 %v1216, %v1634
    %v1643 = vadd.f32 %v1217, %v1635
    %v1644 = vxor.u32 %v1640, 2147483648
    %v1645 = vmul.f32 %v1644, 1.442695
    %v1646 = vpow.pop %v1645
    %v1647 = vadd.f32 %v1646, 1.0
    %v1648 = vrcp.pop %v1647
    %v1649 = vmul.f32 %v1647, %v1648
    %v1650 = vsub.f32 1.0, %v1649
    %v1651 = vmul.f32 %v1648, %v1650
    %v1652 = vadd.f32 %v1648, %v1651
    %vm1653 = vweird.f32 %v1647
    %vm1654 = vweird.f32 %v1648
    %vm1655 = vmor %vm1653, %vm1654
    %v1656 = vsel %vm1655, %v1648, %v1652
    %v1657 = vand.u32 2147483647, %v1647
    %vm1658 = vcmp.eq.f32.partialorder %v1657, 8.507059e+37
    %v1659 = vand.u32 %v1647, 2147483648
    %v1660 = vor.u32 1.1754944e-38, %v1659
    %v1661 = vsel %vm1658, %v1660, %v1656
    %v1662 = vmul.f32 1.0, %v1661
    %v1663 = vxor.u32 %v1641, 2147483648
    %v1664 = vmul.f32 %v1663, 1.442695
    %v1665 = vpow.pop %v1664
    %v1666 = vadd.f32 %v1665, 1.0
    %v1667 = vrcp.pop %v1666
    %v1668 = vmul.f32 %v1666, %v1667
    %v1669 = vsub.f32 1.0, %v1668
    %v1670 = vmul.f32 %v1667, %v1669
    %v1671 = vadd.f32 %v1667, %v1670
    %vm1672 = vweird.f32 %v1666
    %vm1673 = vweird.f32 %v1667
    %vm1674 = vmor %vm1672, %vm1673
    %v1675 = vsel %vm1674, %v1667, %v1671
    %v1676 = vand.u32 2147483647, %v1666
    %vm1677 = vcmp.eq.f32.partialorder %v1676, 8.507059e+37
    %v1678 = vand.u32 %v1666, 2147483648
    %v1679 = vor.u32 1.1754944e-38, %v1678
    %v1680 = vsel %vm1677, %v1679, %v1675
    %v1681 = vmul.f32 1.0, %v1680
    %v1682 = vtanh.pop %v1642
    %v1683 = vxor.u32 %v1643, 2147483648
    %v1684 = vmul.f32 %v1683, 1.442695
    %v1685 = vpow.pop %v1684
    %v1686 = vadd.f32 %v1685, 1.0
    %v1687 = vrcp.pop %v1686
    %v1688 = vmul.f32 %v1686, %v1687
    %v1689 = vsub.f32 1.0, %v1688
    %v1690 = vmul.f32 %v1687, %v1689
    %v1691 = vadd.f32 %v1687, %v1690
    %vm1692 = vweird.f32 %v1686
    %vm1693 = vweird.f32 %v1687
    %vm1694 = vmor %vm1692, %vm1693
    %v1695 = vsel %vm1694, %v1687, %v1691
    %v1696 = vand.u32 2147483647, %v1686
    %vm1697 = vcmp.eq.f32.partialorder %v1696, 8.507059e+37
    %v1698 = vand.u32 %v1686, 2147483648
    %v1699 = vor.u32 1.1754944e-38, %v1698
    %v1700 = vsel %vm1697, %v1699, %v1695
    %v1701 = vmul.f32 1.0, %v1700
    %v1703 = vrot.slane %v1542, 6
    %v1705 = vmul.f32 %v1681, %v1703
    %v1706 = vmul.f32 %v1662, %v1682
    %v1707 = vadd.f32 %v1705, %v1706
    %v1708 = vtanh.pop %v1707
    %v1709 = vmul.f32 %v1701, %v1708
    %vm1710 = vcmp.lt.s32.totalorder %v70, 64
    %v1712 = vrot.slane %v1709, 6
    %v1714 = vsel %vm1710, %v532, %v1712
    %v1715 = vrot.slane %v1544, 2
    %v1717 = vsel %vm1710, %v706, %v1715
    %v1718 = vrot.slane %v1379, 6
    %v1720 = vsel %vm1710, %v871, %v1718
    %v1722 = vrot.slane %v1205, 2
    %v1724 = vsel %vm1710, %v1036, %v1722
    %v1725 = vsel %vm1710, %v1205, %v1054
    %v1726 = vrot.slane %v871, 2
    %v1728 = vsel %vm1710, %v1379, %v1726
    %v1729 = vrot.slane %v706, 6
    %v1731 = vsel %vm1710, %v1544, %v1729
    %v1733 = vrot.slane %v532, 2
    %v1735 = vsel %vm1710, %v1709, %v1733
    %vm1736 = vcmask 1041408
    %v1737 = vsel %vm1736, %v1714, %v1717
    %vm1738 = vcmask 1043456
    %v1739 = vsel %vm1738, %v1737, %v1720
    %vm1740 = vcmask 1045504
    %v1741 = vsel %vm1740, %v1739, %v1724
    %v1742 = vsel %vm1736, %v1725, %v1728
    %v1743 = vsel %vm1738, %v1742, %v1731
    %v1744 = vsel %vm1740, %v1743, %v1735
    %v1745 = vld [vmem:[#allocation6] sm:$0xff]
    %v1746 = vld [vmem:[#allocation6 + $0x8] sm:$0xff]
    %v1747 = vld [vmem:[#allocation6 + $0x10] sm:$0xff]
    %v1748 = vld [vmem:[#allocation6 + $0x18] sm:$0xff]
    %v1749 = vld [vmem:[#allocation6 + $0x20] sm:$0xff]
    %v1750 = vld [vmem:[#allocation6 + $0x28] sm:$0xff]
    %v1751 = vld [vmem:[#allocation6 + $0x30] sm:$0xff]
    %v1752 = vld [vmem:[#allocation6 + $0x38] sm:$0xff]
    %v1753 = vld [vmem:[#allocation6 + $0x40] sm:$0xff]
    %v1754 = vld [vmem:[#allocation6 + $0x48] sm:$0xff]
    %v1755 = vld [vmem:[#allocation6 + $0x50] sm:$0xff]
    %v1756 = vld [vmem:[#allocation6 + $0x58] sm:$0xff]
    %v1757 = vld [vmem:[#allocation6 + $0x60] sm:$0xff]
    %v1758 = vld [vmem:[#allocation6 + $0x68] sm:$0xff]
    %v1759 = vld [vmem:[#allocation6 + $0x70] sm:$0xff]
    %v1760 = vld [vmem:[#allocation6 + $0x78] sm:$0xff]
    %v1761 = vld [vmem:[%s4] sm:$0x1]
    %v1763 = vperm.slane %v1761, 0
    %1765 = vmatpush.msra.mxu0 %v1760
    %1766 = vmatpush.msra.mxu0 %v1759
    %1767 = vmatpush.msra.mxu0 %v1758
    %1768 = vmatpush.msra.mxu0 %v1757
    %1769 = vmatpush.msra.mxu0 %v1756
    %1770 = vmatpush.msra.mxu0 %v1755
    %1771 = vmatpush.msra.mxu0 %v1754
    %1772 = vmatpush.msra.mxu0 %v1753
    %1773 = vmatpush.msra.mxu0 %v1752
    %1774 = vmatpush.msra.mxu0 %v1751
    %1775 = vmatpush.msra.mxu0 %v1750
    %1776 = vmatpush.msra.mxu0 %v1749
    %1777 = vmatpush.msra.mxu0 %v1748
    %1778 = vmatpush.msra.mxu0 %v1747
    %1779 = vmatpush.msra.mxu0 %v1746
    %1780 = vmatpush.msra.mxu0 %v1745
    %1781 = vmatmul.f32.gmra.mxu0 %v1741
    %v1782 = vpop.f32.mrf.mxu0
    %v1783 = vadd.f32 %v1763, %v1782
    %1784 = vmatmul.f32.gmra.mxu0 %v1744
    %v1785 = vpop.f32.mrf.mxu0
    %v1786 = vadd.f32 %v1763, %v1785
    %1787 = vdwg.mxu0
    %1788 = vst [vmem:[%s5] sm:$0xff] %v1783
    %1789 = vst [vmem:[%s5 + $0x8] sm:$0xff] %v1786
    // Predicated region
    $region34: #{doti_forward.1} parent=1 // pred_check
      _
    $region35: #{doti_forward.1} parent=1 // pred_check_branch
      %1791 = sbr.rel (0) target = $region37
    $region36: #{doti_forward.1} parent=1 // pred_region
      _
    $region37: #{doti_forward.1} parent=1 // pred_fallthru
      _
    // Predicated region
    $region38: #{doti_forward.1} parent=1 // pred_check
      _
    $region39: #{doti_forward.1} parent=1 // pred_check_branch
      %1793 = sbr.rel (0) target = $region41
    $region40: #{doti_forward.1} parent=1 // pred_region
      _
    $region41: #{doti_forward.1} parent=1 // pred_fallthru
      _
    %1794 = vsyncpa [#allocation3], 1
    %1795 = vsyncpa [#allocation5], 1

</llo_original>
